<compile_context>
chip_gen: v7x
topology: tpu7x:2x2x1
jax: 0.10.0
libtpu: 0.0.40
codegen_flags: <defaults>
</compile_context>

<pallas_src>
import jax
import jax.numpy as jnp
import numpy as np
from jax.experimental import pallas as pl
from jax.experimental.pallas import tpu as pltpu


def fdgnn_kernel(adj_ref, f_ref, nd_ref, wf_ref, b1_ref, w2_ref, b2_ref,
                 out_ref, acc_ref):
    # adj_ref: (BN, BK)     bf16 0/1 adjacency tile (dst rows x src cols)
    # f_ref:   (BK, Dp)     bf16 pre-scaled features (feat * norm) for src chunk
    # nd_ref:  (BN, 1)      f32 dst-node norm
    # wf_ref:  (Dp, Hp)     bf16 fused W_nb @ W1 (zero-padded)
    # b1_ref:  (1, Hp)      f32 (zero-padded)
    # w2_ref:  (Hp, Cp)     bf16 (mask folded in, zero-padded)
    # b2_ref:  (1, Cp)      f32 (mask folded in, zero-padded)
    # out_ref: (BN, Cp)     f32 logits
    # acc_ref: (BN, Dp)     f32 VMEM accumulator
    k = pl.program_id(1)

    @pl.when(k == 0)
    def _init():
        acc_ref[...] = jnp.zeros_like(acc_ref)

    # Streaming aggregation: acc += adj_blk @ f_scaled_blk (f32 accumulate on MXU).
    acc_ref[...] += jnp.dot(adj_ref[...], f_ref[...],
                            preferred_element_type=jnp.float32)

    @pl.when(k == pl.num_programs(1) - 1)
    def _finalize():
        x = (acc_ref[...] * nd_ref[...]).astype(wf_ref.dtype)        # dst-norm
        x = jnp.dot(x, wf_ref[...],
                    preferred_element_type=jnp.float32) + b1_ref[...]
        x = jnp.maximum(x, 0.0).astype(w2_ref.dtype)                 # ReLU
        out_ref[...] = (jnp.dot(x, w2_ref[...],
                                preferred_element_type=jnp.float32)
                        + b2_ref[...])


def _round_up(x, m):
    return (x + m - 1) // m * m


def custom_fdgnn_forward(adj, feat, norm, w_nb, w1, b1, w2, b2, mask,
                         *, block_n=256, block_k=256,
                         compute_dtype=jnp.bfloat16):
    N, D = feat.shape
    H = w1.shape[1]
    C = w2.shape[1]

    # ---- one-time host/XLA preprocessing (hoisted out of the grid loop) ----
    f_scaled = feat * norm                      # fold src-norm into features
    w_fused = w_nb @ w1                         # fuse SGC weight into first MLP layer
    w2m = w2 * mask                             # fold class mask into last layer
    b2m = b2 * mask

    # Pad node dim so both block sizes divide it; pad feature / hidden / class
    # dims to 128 lanes so all intermediates and stores are lane-dense.
    n_mult = int(np.lcm(block_n, block_k))
    N_pad = _round_up(N, n_mult)
    D_pad = _round_up(D, 128)
    H_pad = _round_up(H, 128)
    C_pad = _round_up(C, 128)

    # Pad adjacency directly in compute dtype (0/1 exact in bf16).
    adj_p = (jnp.zeros((N_pad, N_pad), compute_dtype)
             .at[:N, :N].set(adj.astype(compute_dtype)))
    f_p = (jnp.zeros((N_pad, D_pad), jnp.float32)
           .at[:N, :D].set(f_scaled)).astype(compute_dtype)
    nd_p = jnp.zeros((N_pad, 1), jnp.float32).at[:N, :].set(norm)
    wf_p = (jnp.zeros((D_pad, H_pad), jnp.float32)
            .at[:D, :H].set(w_fused)).astype(compute_dtype)
    b1_p = jnp.zeros((1, H_pad), jnp.float32).at[:, :H].set(b1)
    w2_p = (jnp.zeros((H_pad, C_pad), jnp.float32)
            .at[:H, :C].set(w2m)).astype(compute_dtype)
    b2_p = jnp.zeros((1, C_pad), jnp.float32).at[:, :C].set(b2m)

    grid = (N_pad // block_n, N_pad // block_k)

    out = pl.pallas_call(
        fdgnn_kernel,
        out_shape=jax.ShapeDtypeStruct((N_pad, C_pad), jnp.float32),
        grid_spec=pltpu.PrefetchScalarGridSpec(
            num_scalar_prefetch=0,
            grid=grid,
            in_specs=[
                pl.BlockSpec((block_n, block_k), lambda i, k: (i, k)),  # adj tile
                pl.BlockSpec((block_k, D_pad), lambda i, k: (k, 0)),    # f_scaled tile
                pl.BlockSpec((block_n, 1), lambda i, k: (i, 0)),        # dst norm
                pl.BlockSpec((D_pad, H_pad), lambda i, k: (0, 0)),      # W_nb @ W1
                pl.BlockSpec((1, H_pad), lambda i, k: (0, 0)),          # b1
                pl.BlockSpec((H_pad, C_pad), lambda i, k: (0, 0)),      # W2 * mask
                pl.BlockSpec((1, C_pad), lambda i, k: (0, 0)),          # b2 * mask
            ],
            out_specs=pl.BlockSpec((block_n, C_pad), lambda i, k: (i, 0)),
            scratch_shapes=[pltpu.VMEM((block_n, D_pad), jnp.float32)],
        ),
        compiler_params=pltpu.CompilerParams(
            dimension_semantics=("parallel", "arbitrary")),
    )(adj_p, f_p, nd_p, wf_p, b1_p, w2_p, b2_p)

    return out[:N, :C]


def reference_forward(adj, feat, norm, w_nb, w1, b1, w2, b2, mask):
    f = feat * norm
    h = f @ w_nb
    x = (adj @ h) * norm
    x = jnp.maximum(x @ w1 + b1, 0.0)
    return (x @ w2 + b2) * mask


def kaiming_uniform(key, shape, fan_in, gain=np.sqrt(2.0)):
    bound = gain * np.sqrt(3.0 / fan_in)
    return jax.random.uniform(key, shape, jnp.float32, -bound, bound)


if __name__ == "__main__":
    N, D, H, C = 16, 32, 64, 8          # nodes, d_data, h_dims[0], n_cls
    key = jax.random.PRNGKey(0)
    k_adj, k_feat, k_wnb, k_w1, k_b1, k_w2, k_b2 = jax.random.split(key, 7)

    # deterministic random graph with self-loops (no zero in-degree)
    adj = (jax.random.uniform(k_adj, (N, N)) < 0.3).astype(jnp.float32)
    adj = jnp.maximum(adj, jnp.eye(N, dtype=jnp.float32))   # adj[dst, src]

    feat = jax.random.normal(k_feat, (N, D), jnp.float32)

    # in_degrees[v] = sum over src of adj[v, :], clamped at 1
    degs = jnp.maximum(jnp.sum(adj, axis=1), 1.0)
    norm = jnp.power(degs, -0.5).reshape(N, 1).astype(jnp.float32)

    # parameters (deterministic kaiming-uniform-style init)
    w_nb = kaiming_uniform(k_wnb, (D, D), fan_in=D)                     # SGC W_nb
    w1 = kaiming_uniform(k_w1, (D, H), fan_in=D, gain=1.0)              # Linear(D->H)
    b1 = jax.random.uniform(k_b1, (1, H), jnp.float32,
                            -1.0 / np.sqrt(D), 1.0 / np.sqrt(D))
    w2 = kaiming_uniform(k_w2, (H, C), fan_in=H, gain=1.0)              # Linear(H->C)
    b2 = jax.random.uniform(k_b2, (1, C), jnp.float32,
                            -1.0 / np.sqrt(H), 1.0 / np.sqrt(H))
    mask = jnp.ones((1, C), jnp.float32)                                # cls=None

    logits = custom_fdgnn_forward(adj, feat, norm, w_nb, w1, b1, w2, b2, mask)
    logits = jax.block_until_ready(logits)

    ref = reference_forward(adj, feat, norm, w_nb, w1, b1, w2, b2, mask)
    # bf16 MXU inputs + W_nb/W1 fusion change rounding vs. the pure-f32 reference.
    np.testing.assert_allclose(np.asarray(logits), np.asarray(ref),
                               rtol=3e-2, atol=3e-2)
    # e_list returned by the module is [] in this config (twp=False)
    print("KERNEL_OK")
</pallas_src>

<mosaic_0001>
module attributes {stable_mosaic.version = 11 : i64} {
  func.func @fdgnn_kernel(%arg0: i32, %arg1: i32, %arg2: memref<256x256xbf16, #tpu.memory_space<vmem>>, %arg3: memref<256x128xbf16, #tpu.memory_space<vmem>>, %arg4: memref<256x1xf32, #tpu.memory_space<vmem>>, %arg5: memref<128x128xbf16, #tpu.memory_space<vmem>>, %arg6: memref<1x128xf32, #tpu.memory_space<vmem>>, %arg7: memref<128x128xbf16, #tpu.memory_space<vmem>>, %arg8: memref<1x128xf32, #tpu.memory_space<vmem>>, %arg9: memref<256x128xf32, #tpu.memory_space<vmem>>, %arg10: memref<256x128xf32, #tpu.memory_space<vmem>>) attributes {dimension_semantics = [#tpu.dimension_semantics<parallel>, #tpu.dimension_semantics<arbitrary>], iteration_bounds = array<i64: 1, 1>, scalar_prefetch = 0 : i64, scratch_operands = 1 : i64, tpu.core_type = #tpu.core_type<tc>, window_params = [{transform_indices = @transform_0, window_bounds = array<i64: 256, 256>}, {transform_indices = @transform_1, window_bounds = array<i64: 256, 128>}, {transform_indices = @transform_2, window_bounds = array<i64: 256, 1>}, {pipeline_mode = #tpu.pipeline_mode<synchronous>, transform_indices = @transform_3, window_bounds = array<i64: 128, 128>}, {pipeline_mode = #tpu.pipeline_mode<synchronous>, transform_indices = @transform_4, window_bounds = array<i64: 1, 128>}, {pipeline_mode = #tpu.pipeline_mode<synchronous>, transform_indices = @transform_5, window_bounds = array<i64: 128, 128>}, {pipeline_mode = #tpu.pipeline_mode<synchronous>, transform_indices = @transform_6, window_bounds = array<i64: 1, 128>}, {transform_indices = @transform_7, window_bounds = array<i64: 256, 128>}]} {
    %c0_i32 = arith.constant 0 : i32
    %0 = arith.cmpi eq, %arg1, %c0_i32 : i32
    %1 = arith.extui %0 : i1 to i32
    %c0_i32_0 = arith.constant 0 : i32
    %2 = arith.cmpi ne, %1, %c0_i32_0 : i32
    scf.if %2 {
      %cst_10 = arith.constant 0.000000e+00 : f32
      %12 = vector.broadcast %cst_10 : f32 to vector<256x128xf32>
      %c0_11 = arith.constant 0 : index
      %c0_12 = arith.constant 0 : index
      %13 = vector.load %arg10[%c0_11, %c0_12] : memref<256x128xf32, #tpu.memory_space<vmem>>, vector<256x128xf32>
      tpu.vector_store %arg10[%c0_11, %c0_12], %12 {strides = array<i32>} : memref<256x128xf32, #tpu.memory_space<vmem>>, vector<256x128xf32>,
    } else {
    }
    %c0 = arith.constant 0 : index
    %c0_1 = arith.constant 0 : index
    %3 = vector.load %arg10[%c0, %c0_1] : memref<256x128xf32, #tpu.memory_space<vmem>>, vector<256x128xf32>
    %c0_2 = arith.constant 0 : index
    %c0_3 = arith.constant 0 : index
    %4 = vector.load %arg2[%c0_2, %c0_3] : memref<256x256xbf16, #tpu.memory_space<vmem>>, vector<256x256xbf16>
    %c0_4 = arith.constant 0 : index
    %c0_5 = arith.constant 0 : index
    %5 = vector.load %arg3[%c0_4, %c0_5] : memref<256x128xbf16, #tpu.memory_space<vmem>>, vector<256x128xbf16>
    %cst = arith.constant dense<0.000000e+00> : vector<256x128xf32>
    %6 = tpu.matmul %4, %5, %cst {dimension_numbers = #tpu.dot_dimension_numbers<[1], [0], [0], [1], [0, 0, 1, 1], [], []>} : vector<256x256xbf16>, vector<256x128xbf16>, vector<256x128xf32> -> vector<256x128xf32>
    %7 = arith.addf %3, %6 : vector<256x128xf32>
    %c0_6 = arith.constant 0 : index
    %c0_7 = arith.constant 0 : index
    %8 = vector.load %arg10[%c0_6, %c0_7] : memref<256x128xf32, #tpu.memory_space<vmem>>, vector<256x128xf32>
    tpu.vector_store %arg10[%c0_6, %c0_7], %7 {strides = array<i32>} : memref<256x128xf32, #tpu.memory_space<vmem>>, vector<256x128xf32>,
    %c0_i32_8 = arith.constant 0 : i32
    %9 = arith.cmpi eq, %arg1, %c0_i32_8 : i32
    %10 = arith.extui %9 : i1 to i32
    %c0_i32_9 = arith.constant 0 : i32
    %11 = arith.cmpi ne, %10, %c0_i32_9 : i32
    scf.if %11 {
      %c0_10 = arith.constant 0 : index
      %c0_11 = arith.constant 0 : index
      %12 = vector.load %arg10[%c0_10, %c0_11] : memref<256x128xf32, #tpu.memory_space<vmem>>, vector<256x128xf32>
      %c0_12 = arith.constant 0 : index
      %c0_13 = arith.constant 0 : index
      %13 = vector.load %arg4[%c0_12, %c0_13] : memref<256x1xf32, #tpu.memory_space<vmem>>, vector<256x1xf32>
      %14 = vector.broadcast %13 : vector<256x1xf32> to vector<256x128xf32>
      %15 = arith.mulf %12, %14 : vector<256x128xf32>
      %16 = arith.truncf %15 : vector<256x128xf32> to vector<256x128xbf16>
      %c0_14 = arith.constant 0 : index
      %c0_15 = arith.constant 0 : index
      %17 = vector.load %arg5[%c0_14, %c0_15] : memref<128x128xbf16, #tpu.memory_space<vmem>>, vector<128x128xbf16>
      %cst_16 = arith.constant dense<0.000000e+00> : vector<256x128xf32>
      %18 = tpu.matmul %16, %17, %cst_16 {dimension_numbers = #tpu.dot_dimension_numbers<[1], [0], [0], [1], [0, 0, 1, 1], [], []>} : vector<256x128xbf16>, vector<128x128xbf16>, vector<256x128xf32> -> vector<256x128xf32>
      %c0_17 = arith.constant 0 : index
      %c0_18 = arith.constant 0 : index
      %19 = vector.load %arg6[%c0_17, %c0_18] : memref<1x128xf32, #tpu.memory_space<vmem>>, vector<1x128xf32>
      %20 = vector.broadcast %19 : vector<1x128xf32> to vector<256x128xf32>
      %21 = arith.addf %18, %20 : vector<256x128xf32>
      %cst_19 = arith.constant 0.000000e+00 : f32
      %22 = vector.broadcast %cst_19 : f32 to vector<256x128xf32>
      %23 = arith.maximumf %21, %22 : vector<256x128xf32>
      %24 = arith.truncf %23 : vector<256x128xf32> to vector<256x128xbf16>
      %c0_20 = arith.constant 0 : index
      %c0_21 = arith.constant 0 : index
      %25 = vector.load %arg7[%c0_20, %c0_21] : memref<128x128xbf16, #tpu.memory_space<vmem>>, vector<128x128xbf16>
      %cst_22 = arith.constant dense<0.000000e+00> : vector<256x128xf32>
      %26 = tpu.matmul %24, %25, %cst_22 {dimension_numbers = #tpu.dot_dimension_numbers<[1], [0], [0], [1], [0, 0, 1, 1], [], []>} : vector<256x128xbf16>, vector<128x128xbf16>, vector<256x128xf32> -> vector<256x128xf32>
      %c0_23 = arith.constant 0 : index
      %c0_24 = arith.constant 0 : index
      %27 = vector.load %arg8[%c0_23, %c0_24] : memref<1x128xf32, #tpu.memory_space<vmem>>, vector<1x128xf32>
      %28 = vector.broadcast %27 : vector<1x128xf32> to vector<256x128xf32>
      %29 = arith.addf %26, %28 : vector<256x128xf32>
      %c0_25 = arith.constant 0 : index
      %c0_26 = arith.constant 0 : index
      %30 = vector.load %arg9[%c0_25, %c0_26] : memref<256x128xf32, #tpu.memory_space<vmem>>, vector<256x128xf32>
      tpu.vector_store %arg9[%c0_25, %c0_26], %29 {strides = array<i32>} : memref<256x128xf32, #tpu.memory_space<vmem>>, vector<256x128xf32>,
    } else {
    }
    return
  }
  func.func @transform_0(%arg0: i32, %arg1: i32) -> (i32, i32) {
    %c0_i32 = arith.constant 0 : i32
    return %arg0, %arg1 : i32, i32
  }
  func.func @transform_1(%arg0: i32, %arg1: i32) -> (i32, i32) {
    %c0_i32 = arith.constant 0 : i32
    %c0_i32_0 = arith.constant 0 : i32
    return %arg1, %c0_i32 : i32, i32
  }
  func.func @transform_2(%arg0: i32, %arg1: i32) -> (i32, i32) {
    %c0_i32 = arith.constant 0 : i32
    %c0_i32_0 = arith.constant 0 : i32
    return %arg0, %c0_i32 : i32, i32
  }
  func.func @transform_3(%arg0: i32, %arg1: i32) -> (i32, i32) {
    %c0_i32 = arith.constant 0 : i32
    %c0_i32_0 = arith.constant 0 : i32
    %c0_i32_1 = arith.constant 0 : i32
    return %c0_i32, %c0_i32_0 : i32, i32
  }
  func.func @transform_4(%arg0: i32, %arg1: i32) -> (i32, i32) {
    %c0_i32 = arith.constant 0 : i32
    %c0_i32_0 = arith.constant 0 : i32
    %c0_i32_1 = arith.constant 0 : i32
    return %c0_i32, %c0_i32_0 : i32, i32
  }
  func.func @transform_5(%arg0: i32, %arg1: i32) -> (i32, i32) {
    %c0_i32 = arith.constant 0 : i32
    %c0_i32_0 = arith.constant 0 : i32
    %c0_i32_1 = arith.constant 0 : i32
    return %c0_i32, %c0_i32_0 : i32, i32
  }
  func.func @transform_6(%arg0: i32, %arg1: i32) -> (i32, i32) {
    %c0_i32 = arith.constant 0 : i32
    %c0_i32_0 = arith.constant 0 : i32
    %c0_i32_1 = arith.constant 0 : i32
    return %c0_i32, %c0_i32_0 : i32, i32
  }
  func.func @transform_7(%arg0: i32, %arg1: i32) -> (i32, i32) {
    %c0_i32 = arith.constant 0 : i32
    %c0_i32_0 = arith.constant 0 : i32
    return %arg0, %c0_i32 : i32, i32
  }
}

</mosaic_0001>

<llo_original>
// kernel: tpu_custom_call.1
$region0: #{tpu_custom_call.1}
  #allocation0 [shape = 'u32[]', space=smem, size = 0x4, offset = 0x4, fixed_abs, tag = 'smem constant byte address 0x4 - core index']
  #allocation1 [shape = 'u32[144,128]{1,0:T(1,128)}', space=vmem, size = 0x12000, scoped, tag = 'internal scratch']
  #allocation2 [shape = 'f32[256,128]{1,0:T(8,128)}', space=vmem, size = 0x20000, scoped, tag = 'scratch operand']
  %s0 = inlined_call_operand.vmem [shape: bf16[256,256], index: 0, kind: input, shape index: {}]
  %s1 = inlined_call_operand.hbm [shape: bf16[256,128], index: 1, kind: input, shape index: {}]
  %s2 = inlined_call_operand.vmem [shape: f32[256,1], index: 2, kind: input, shape index: {}]
  %s3 = inlined_call_operand.hbm [shape: bf16[128,128], index: 3, kind: input, shape index: {}]
  %s4 = inlined_call_operand.vmem [shape: f32[1,128], index: 4, kind: input, shape index: {}]
  %s5 = inlined_call_operand.hbm [shape: bf16[128,128], index: 5, kind: input, shape index: {}]
  %s6 = inlined_call_operand.vmem [shape: f32[1,128], index: 6, kind: input, shape index: {}]
  %s7 = inlined_call_operand.hbm [shape: f32[256,128], index: 7, kind: output, shape index: {}]
  %s8 = sld [smem:[#allocation0]]
  $region58: #{tpu_custom_call.1} parent=0
    _
  %s10 = ssub.s32 1, %s8
  %s11 = scalar_select 0, %s10, %s8
  $region1: #{tpu_custom_call.1} parent=0
    #allocation3 [shape = 'u8[65536]{0}', space=vmem, size = 0x10000, scoped, tag = 'input window, operand 1, single buffered']
    #allocation4 [shape = 's32[1]{0}', space=sflag, size = 0x4, scoped, tag = 'scoped memory for tpu_custom_call.1']
    #allocation5 [shape = 's32[1]{0}', space=sflag, size = 0x4, scoped, tag = 'scoped memory for tpu_custom_call.1']
    #allocation6 [shape = 'u8[32768]{0}', space=vmem, size = 0x8000, scoped, tag = 'input window, operand 3, single buffered']
    #allocation7 [shape = 's32[1]{0}', space=sflag, size = 0x4, scoped, tag = 'scoped memory for tpu_custom_call.1']
    #allocation8 [shape = 'u8[32768]{0}', space=vmem, size = 0x8000, scoped, tag = 'input window, operand 5, single buffered']
    #allocation9 [shape = 'u8[131072]{0}', space=vmem, size = 0x20000, scoped, tag = 'output window, operand 0, single buffered']
    %12 = vsyncpa [#allocation4], 0
    %13 = vsyncpa [#allocation7], 0
    %14 = vsyncpa [#allocation5], 0
    // Predicated region
    $region2: #{tpu_custom_call.1} parent=1 // pred_check
      _
    $region3: #{tpu_custom_call.1} parent=1 // pred_check_branch
      %16 = sbr.rel (0) target = $region5
    $region4: #{tpu_custom_call.1} parent=1 // pred_region
      _
    $region5: #{tpu_custom_call.1} parent=1 // pred_fallthru
      _
    // Predicated region
    $region6: #{tpu_custom_call.1} parent=1 // pred_check
      _
    $region7: #{tpu_custom_call.1} parent=1 // pred_check_branch
      %18 = sbr.rel (0) target = $region9
    $region8: #{tpu_custom_call.1} parent=1 // pred_region
      %s20 = ssub.s32 2048, 2048
      %21 = vsyncadd [#allocation4], %s20
      %s22 = sshll.u32 [#allocation3], 4
      %s23 = int_to_ptr.vmem [resolvable:$true] %s22
      %28 = dma.hbm_to_vmem [thread:$0]  %s1, 2048, %s23, [#allocation4], 64, 64, 4
    $region9: #{tpu_custom_call.1} parent=1 // pred_fallthru
      _
    // Predicated region
    $region10: #{tpu_custom_call.1} parent=1 // pred_check
      _
    $region11: #{tpu_custom_call.1} parent=1 // pred_check_branch
      %30 = sbr.rel (0) target = $region13
    $region12: #{tpu_custom_call.1} parent=1 // pred_region
      _
    $region13: #{tpu_custom_call.1} parent=1 // pred_fallthru
      _
    // Predicated region
    $region14: #{tpu_custom_call.1} parent=1 // pred_check
      _
    $region15: #{tpu_custom_call.1} parent=1 // pred_check_branch
      %32 = sbr.rel (0) target = $region17
    $region16: #{tpu_custom_call.1} parent=1 // pred_region
      %s34 = ssub.s32 1024, 1024
      %35 = vsyncadd [#allocation7], %s34
      %s36 = sshll.u32 [#allocation6], 4
      %s37 = int_to_ptr.vmem [resolvable:$true] %s36
      %42 = dma.hbm_to_vmem [thread:$0]  %s3, 1024, %s37, [#allocation7], 64, 64, 4
    $region17: #{tpu_custom_call.1} parent=1 // pred_fallthru
      _
    // Predicated region
    $region18: #{tpu_custom_call.1} parent=1 // pred_check
      _
    $region19: #{tpu_custom_call.1} parent=1 // pred_check_branch
      %44 = sbr.rel (0) target = $region21
    $region20: #{tpu_custom_call.1} parent=1 // pred_region
      _
    $region21: #{tpu_custom_call.1} parent=1 // pred_fallthru
      _
    // Predicated region
    $region22: #{tpu_custom_call.1} parent=1 // pred_check
      _
    $region23: #{tpu_custom_call.1} parent=1 // pred_check_branch
      %46 = sbr.rel (0) target = $region25
    $region24: #{tpu_custom_call.1} parent=1 // pred_region
      %s48 = ssub.s32 1024, 1024
      %49 = vsyncadd [#allocation7], %s48
      %s50 = sshll.u32 [#allocation8], 4
      %s51 = int_to_ptr.vmem [resolvable:$true] %s50
      %56 = dma.hbm_to_vmem [thread:$0]  %s5, 1024, %s51, [#allocation7], 64, 64, 4
    $region25: #{tpu_custom_call.1} parent=1 // pred_fallthru
      _
    // Predicated region
    $region26: #{tpu_custom_call.1} parent=1 // pred_check
      _
    $region27: #{tpu_custom_call.1} parent=1 // pred_check_branch
      %58 = sbr.rel (0) target = $region29
    $region28: #{tpu_custom_call.1} parent=1 // pred_region
      _
    $region29: #{tpu_custom_call.1} parent=1 // pred_fallthru
      _
    // Predicated region
    $region30: #{tpu_custom_call.1} parent=1 // pred_check
      _
    $region31: #{tpu_custom_call.1} parent=1 // pred_check_branch
      %60 = sbr.rel (0) target = $region33
    $region32: #{tpu_custom_call.1} parent=1 // pred_region
      %61 = dma.done [#allocation4], 2048
    $region33: #{tpu_custom_call.1} parent=1 // pred_fallthru
      _
    // Predicated region
    $region34: #{tpu_custom_call.1} parent=1 // pred_check
      _
    $region35: #{tpu_custom_call.1} parent=1 // pred_check_branch
      %63 = sbr.rel (0) target = $region37
    $region36: #{tpu_custom_call.1} parent=1 // pred_region
      %64 = dma.done [#allocation7], 1024
    $region37: #{tpu_custom_call.1} parent=1 // pred_fallthru
      _
    // Predicated region
    $region38: #{tpu_custom_call.1} parent=1 // pred_check
      _
    $region39: #{tpu_custom_call.1} parent=1 // pred_check_branch
      %66 = sbr.rel (0) target = $region41
    $region40: #{tpu_custom_call.1} parent=1 // pred_region
      %67 = dma.done [#allocation7], 1024
    $region41: #{tpu_custom_call.1} parent=1 // pred_fallthru
      _
    %p69 = scmp.eq.s32.totalorder 0, 0
    // Predicated region
    $region42: #{tpu_custom_call.1} parent=1 // pred_check
      %p70 = pneg %p69
    $region43: #{tpu_custom_call.1} parent=1 // pred_check_branch
      %72 = sbr.rel (%p70) target = $region45
    $region44: #{tpu_custom_call.1} parent=1 // pred_region
      %73 = vst [vmem:[#allocation2] sm:$0xff] 0.0
      %74 = vst [vmem:[#allocation2 + $0x8] sm:$0xff] 0.0
      %75 = vst [vmem:[#allocation2 + $0x10] sm:$0xff] 0.0
      %76 = vst [vmem:[#allocation2 + $0x18] sm:$0xff] 0.0
      %77 = vst [vmem:[#allocation2 + $0x20] sm:$0xff] 0.0
      %78 = vst [vmem:[#allocation2 + $0x28] sm:$0xff] 0.0
      %79 = vst [vmem:[#allocation2 + $0x30] sm:$0xff] 0.0
      %80 = vst [vmem:[#allocation2 + $0x38] sm:$0xff] 0.0
      %81 = vst [vmem:[#allocation2 + $0x40] sm:$0xff] 0.0
      %82 = vst [vmem:[#allocation2 + $0x48] sm:$0xff] 0.0
      %83 = vst [vmem:[#allocation2 + $0x50] sm:$0xff] 0.0
      %84 = vst [vmem:[#allocation2 + $0x58] sm:$0xff] 0.0
      %85 = vst [vmem:[#allocation2 + $0x60] sm:$0xff] 0.0
      %86 = vst [vmem:[#allocation2 + $0x68] sm:$0xff] 0.0
      %87 = vst [vmem:[#allocation2 + $0x70] sm:$0xff] 0.0
      %88 = vst [vmem:[#allocation2 + $0x78] sm:$0xff] 0.0
      %89 = vst [vmem:[#allocation2 + $0x80] sm:$0xff] 0.0
      %90 = vst [vmem:[#allocation2 + $0x88] sm:$0xff] 0.0
      %91 = vst [vmem:[#allocation2 + $0x90] sm:$0xff] 0.0
      %92 = vst [vmem:[#allocation2 + $0x98] sm:$0xff] 0.0
      %93 = vst [vmem:[#allocation2 + $0xa0] sm:$0xff] 0.0
      %94 = vst [vmem:[#allocation2 + $0xa8] sm:$0xff] 0.0
      %95 = vst [vmem:[#allocation2 + $0xb0] sm:$0xff] 0.0
      %96 = vst [vmem:[#allocation2 + $0xb8] sm:$0xff] 0.0
      %97 = vst [vmem:[#allocation2 + $0xc0] sm:$0xff] 0.0
      %98 = vst [vmem:[#allocation2 + $0xc8] sm:$0xff] 0.0
      %99 = vst [vmem:[#allocation2 + $0xd0] sm:$0xff] 0.0
      %100 = vst [vmem:[#allocation2 + $0xd8] sm:$0xff] 0.0
      %101 = vst [vmem:[#allocation2 + $0xe0] sm:$0xff] 0.0
      %102 = vst [vmem:[#allocation2 + $0xe8] sm:$0xff] 0.0
      %103 = vst [vmem:[#allocation2 + $0xf0] sm:$0xff] 0.0
      %104 = vst [vmem:[#allocation2 + $0xf8] sm:$0xff] 0.0
    $region45: #{tpu_custom_call.1} parent=1 // pred_fallthru
      _
    %v105 = vld [vmem:[#allocation2] sm:$0xff]
    %v106 = vld [vmem:[#allocation2 + $0x8] sm:$0xff]
    %v107 = vld [vmem:[#allocation2 + $0x10] sm:$0xff]
    %v108 = vld [vmem:[#allocation2 + $0x18] sm:$0xff]
    %v109 = vld [vmem:[#allocation2 + $0x20] sm:$0xff]
    %v110 = vld [vmem:[#allocation2 + $0x28] sm:$0xff]
    %v111 = vld [vmem:[#allocation2 + $0x30] sm:$0xff]
    %v112 = vld [vmem:[#allocation2 + $0x38] sm:$0xff]
    %v113 = vld [vmem:[#allocation2 + $0x40] sm:$0xff]
    %v114 = vld [vmem:[#allocation2 + $0x48] sm:$0xff]
    %v115 = vld [vmem:[#allocation2 + $0x50] sm:$0xff]
    %v116 = vld [vmem:[#allocation2 + $0x58] sm:$0xff]
    %v117 = vld [vmem:[#allocation2 + $0x60] sm:$0xff]
    %v118 = vld [vmem:[#allocation2 + $0x68] sm:$0xff]
    %v119 = vld [vmem:[#allocation2 + $0x70] sm:$0xff]
    %v120 = vld [vmem:[#allocation2 + $0x78] sm:$0xff]
    %v121 = vld [vmem:[#allocation2 + $0x80] sm:$0xff]
    %v122 = vld [vmem:[#allocation2 + $0x88] sm:$0xff]
    %v123 = vld [vmem:[#allocation2 + $0x90] sm:$0xff]
    %v124 = vld [vmem:[#allocation2 + $0x98] sm:$0xff]
    %v125 = vld [vmem:[#allocation2 + $0xa0] sm:$0xff]
    %v126 = vld [vmem:[#allocation2 + $0xa8] sm:$0xff]
    %v127 = vld [vmem:[#allocation2 + $0xb0] sm:$0xff]
    %v128 = vld [vmem:[#allocation2 + $0xb8] sm:$0xff]
    %v129 = vld [vmem:[#allocation2 + $0xc0] sm:$0xff]
    %v130 = vld [vmem:[#allocation2 + $0xc8] sm:$0xff]
    %v131 = vld [vmem:[#allocation2 + $0xd0] sm:$0xff]
    %v132 = vld [vmem:[#allocation2 + $0xd8] sm:$0xff]
    %v133 = vld [vmem:[#allocation2 + $0xe0] sm:$0xff]
    %v134 = vld [vmem:[#allocation2 + $0xe8] sm:$0xff]
    %v135 = vld [vmem:[#allocation2 + $0xf0] sm:$0xff]
    %v136 = vld [vmem:[#allocation2 + $0xf8] sm:$0xff]
    %v137 = vld [vmem:[%s0] sm:$0xff]
    %v138 = vld [vmem:[%s0 + $0x8] sm:$0xff]
    %v139 = vld [vmem:[%s0 + $0x10] sm:$0xff]
    %v140 = vld [vmem:[%s0 + $0x18] sm:$0xff]
    %v141 = vld [vmem:[%s0 + $0x20] sm:$0xff]
    %v142 = vld [vmem:[%s0 + $0x28] sm:$0xff]
    %v143 = vld [vmem:[%s0 + $0x30] sm:$0xff]
    %v144 = vld [vmem:[%s0 + $0x38] sm:$0xff]
    %v145 = vld [vmem:[%s0 + $0x40] sm:$0xff]
    %v146 = vld [vmem:[%s0 + $0x48] sm:$0xff]
    %v147 = vld [vmem:[%s0 + $0x50] sm:$0xff]
    %v148 = vld [vmem:[%s0 + $0x58] sm:$0xff]
    %v149 = vld [vmem:[%s0 + $0x60] sm:$0xff]
    %v150 = vld [vmem:[%s0 + $0x68] sm:$0xff]
    %v151 = vld [vmem:[%s0 + $0x70] sm:$0xff]
    %v152 = vld [vmem:[%s0 + $0x78] sm:$0xff]
    %v153 = vld [vmem:[%s0 + $0x80] sm:$0xff]
    %v154 = vld [vmem:[%s0 + $0x88] sm:$0xff]
    %v155 = vld [vmem:[%s0 + $0x90] sm:$0xff]
    %v156 = vld [vmem:[%s0 + $0x98] sm:$0xff]
    %v157 = vld [vmem:[%s0 + $0xa0] sm:$0xff]
    %v158 = vld [vmem:[%s0 + $0xa8] sm:$0xff]
    %v159 = vld [vmem:[%s0 + $0xb0] sm:$0xff]
    %v160 = vld [vmem:[%s0 + $0xb8] sm:$0xff]
    %v161 = vld [vmem:[%s0 + $0xc0] sm:$0xff]
    %v162 = vld [vmem:[%s0 + $0xc8] sm:$0xff]
    %v163 = vld [vmem:[%s0 + $0xd0] sm:$0xff]
    %v164 = vld [vmem:[%s0 + $0xd8] sm:$0xff]
    %v165 = vld [vmem:[%s0 + $0xe0] sm:$0xff]
    %v166 = vld [vmem:[%s0 + $0xe8] sm:$0xff]
    %v167 = vld [vmem:[%s0 + $0xf0] sm:$0xff]
    %v168 = vld [vmem:[%s0 + $0xf8] sm:$0xff]
    %v169 = vld [vmem:[#allocation3] sm:$0xf]
    %v170 = vld [vmem:[#allocation3 + $0x4] sm:$0xf]
    %v171 = vld [vmem:[#allocation3 + $0x8] sm:$0xf]
    %v172 = vld [vmem:[#allocation3 + $0xc] sm:$0xf]
    %v173 = vld [vmem:[#allocation3 + $0x10] sm:$0xf]
    %v174 = vld [vmem:[#allocation3 + $0x14] sm:$0xf]
    %v175 = vld [vmem:[#allocation3 + $0x18] sm:$0xf]
    %v176 = vld [vmem:[#allocation3 + $0x1c] sm:$0xf]
    %v177 = vld [vmem:[#allocation3 + $0x20] sm:$0xf]
    %v178 = vld [vmem:[#allocation3 + $0x24] sm:$0xf]
    %v179 = vld [vmem:[#allocation3 + $0x28] sm:$0xf]
    %v180 = vld [vmem:[#allocation3 + $0x2c] sm:$0xf]
    %v181 = vld [vmem:[#allocation3 + $0x30] sm:$0xf]
    %v182 = vld [vmem:[#allocation3 + $0x34] sm:$0xf]
    %v183 = vld [vmem:[#allocation3 + $0x38] sm:$0xf]
    %v184 = vld [vmem:[#allocation3 + $0x3c] sm:$0xf]
    %v185 = vld [vmem:[#allocation3 + $0x40] sm:$0xf]
    %v186 = vld [vmem:[#allocation3 + $0x44] sm:$0xf]
    %v187 = vld [vmem:[#allocation3 + $0x48] sm:$0xf]
    %v188 = vld [vmem:[#allocation3 + $0x4c] sm:$0xf]
    %v189 = vld [vmem:[#allocation3 + $0x50] sm:$0xf]
    %v190 = vld [vmem:[#allocation3 + $0x54] sm:$0xf]
    %v191 = vld [vmem:[#allocation3 + $0x58] sm:$0xf]
    %v192 = vld [vmem:[#allocation3 + $0x5c] sm:$0xf]
    %v193 = vld [vmem:[#allocation3 + $0x60] sm:$0xf]
    %v194 = vld [vmem:[#allocation3 + $0x64] sm:$0xf]
    %v195 = vld [vmem:[#allocation3 + $0x68] sm:$0xf]
    %v196 = vld [vmem:[#allocation3 + $0x6c] sm:$0xf]
    %v197 = vld [vmem:[#allocation3 + $0x70] sm:$0xf]
    %v198 = vld [vmem:[#allocation3 + $0x74] sm:$0xf]
    %v199 = vld [vmem:[#allocation3 + $0x78] sm:$0xf]
    %v200 = vld [vmem:[#allocation3 + $0x7c] sm:$0xf]
    %v233 = vunpack.c.l.b16 %v137
    %v234 = vunpack.c.h.b16 %v137
    %v235 = vunpack.c.l.b16 %v138
    %v236 = vunpack.c.h.b16 %v138
    %v237 = vunpack.c.l.b16 %v139
    %v238 = vunpack.c.h.b16 %v139
    %v239 = vunpack.c.l.b16 %v140
    %v240 = vunpack.c.h.b16 %v140
    %v241 = vunpack.c.l.b16 %v141
    %v242 = vunpack.c.h.b16 %v141
    %v243 = vunpack.c.l.b16 %v142
    %v244 = vunpack.c.h.b16 %v142
    %v245 = vunpack.c.l.b16 %v143
    %v246 = vunpack.c.h.b16 %v143
    %v247 = vunpack.c.l.b16 %v144
    %v248 = vunpack.c.h.b16 %v144
    %v249 = vunpack.c.l.b16 %v145
    %v250 = vunpack.c.h.b16 %v145
    %v251 = vunpack.c.l.b16 %v146
    %v252 = vunpack.c.h.b16 %v146
    %v253 = vunpack.c.l.b16 %v147
    %v254 = vunpack.c.h.b16 %v147
    %v255 = vunpack.c.l.b16 %v148
    %v256 = vunpack.c.h.b16 %v148
    %v257 = vunpack.c.l.b16 %v149
    %v258 = vunpack.c.h.b16 %v149
    %v259 = vunpack.c.l.b16 %v150
    %v260 = vunpack.c.h.b16 %v150
    %v261 = vunpack.c.l.b16 %v151
    %v262 = vunpack.c.h.b16 %v151
    %v263 = vunpack.c.l.b16 %v152
    %v264 = vunpack.c.h.b16 %v152
    %v265 = vunpack.c.l.b16 %v153
    %v266 = vunpack.c.h.b16 %v153
    %v267 = vunpack.c.l.b16 %v154
    %v268 = vunpack.c.h.b16 %v154
    %v269 = vunpack.c.l.b16 %v155
    %v270 = vunpack.c.h.b16 %v155
    %v271 = vunpack.c.l.b16 %v156
    %v272 = vunpack.c.h.b16 %v156
    %v273 = vunpack.c.l.b16 %v157
    %v274 = vunpack.c.h.b16 %v157
    %v275 = vunpack.c.l.b16 %v158
    %v276 = vunpack.c.h.b16 %v158
    %v277 = vunpack.c.l.b16 %v159
    %v278 = vunpack.c.h.b16 %v159
    %v279 = vunpack.c.l.b16 %v160
    %v280 = vunpack.c.h.b16 %v160
    %v281 = vunpack.c.l.b16 %v161
    %v282 = vunpack.c.h.b16 %v161
    %v283 = vunpack.c.l.b16 %v162
    %v284 = vunpack.c.h.b16 %v162
    %v285 = vunpack.c.l.b16 %v163
    %v286 = vunpack.c.h.b16 %v163
    %v287 = vunpack.c.l.b16 %v164
    %v288 = vunpack.c.h.b16 %v164
    %v289 = vunpack.c.l.b16 %v165
    %v290 = vunpack.c.h.b16 %v165
    %v291 = vunpack.c.l.b16 %v166
    %v292 = vunpack.c.h.b16 %v166
    %v293 = vunpack.c.l.b16 %v167
    %v294 = vunpack.c.h.b16 %v167
    %v295 = vunpack.c.l.b16 %v168
    %v296 = vunpack.c.h.b16 %v168
    %v297 = vpack.c.b16 %v235, %v233
    %v298 = vpack.c.b16 %v236, %v234
    %v299 = vpack.c.b16 %v239, %v237
    %v300 = vpack.c.b16 %v240, %v238
    %v301 = vpack.c.b16 %v243, %v241
    %v302 = vpack.c.b16 %v244, %v242
    %v303 = vpack.c.b16 %v247, %v245
    %v304 = vpack.c.b16 %v248, %v246
    %v305 = vpack.c.b16 %v251, %v249
    %v306 = vpack.c.b16 %v252, %v250
    %v307 = vpack.c.b16 %v255, %v253
    %v308 = vpack.c.b16 %v256, %v254
    %v309 = vpack.c.b16 %v259, %v257
    %v310 = vpack.c.b16 %v260, %v258
    %v311 = vpack.c.b16 %v263, %v261
    %v312 = vpack.c.b16 %v264, %v262
    %v313 = vpack.c.b16 %v267, %v265
    %v314 = vpack.c.b16 %v268, %v266
    %v315 = vpack.c.b16 %v271, %v269
    %v316 = vpack.c.b16 %v272, %v270
    %v317 = vpack.c.b16 %v275, %v273
    %v318 = vpack.c.b16 %v276, %v274
    %v319 = vpack.c.b16 %v279, %v277
    %v320 = vpack.c.b16 %v280, %v278
    %v321 = vpack.c.b16 %v283, %v281
    %v322 = vpack.c.b16 %v284, %v282
    %v323 = vpack.c.b16 %v287, %v285
    %v324 = vpack.c.b16 %v288, %v286
    %v325 = vpack.c.b16 %v291, %v289
    %v326 = vpack.c.b16 %v292, %v290
    %v327 = vpack.c.b16 %v295, %v293
    %v328 = vpack.c.b16 %v296, %v294
    %v393 = vunpack.c.l.b16 %v169
    %v394 = vunpack.c.l.b16 %v170
    %v395 = vunpack.c.l.b16 %v171
    %v396 = vunpack.c.l.b16 %v172
    %v397 = vunpack.c.l.b16 %v173
    %v398 = vunpack.c.l.b16 %v174
    %v399 = vunpack.c.l.b16 %v175
    %v400 = vunpack.c.l.b16 %v176
    %v401 = vunpack.c.l.b16 %v177
    %v402 = vunpack.c.l.b16 %v178
    %v403 = vunpack.c.l.b16 %v179
    %v404 = vunpack.c.l.b16 %v180
    %v405 = vunpack.c.l.b16 %v181
    %v406 = vunpack.c.l.b16 %v182
    %v407 = vunpack.c.l.b16 %v183
    %v408 = vunpack.c.l.b16 %v184
    %v409 = vunpack.c.l.b16 %v185
    %v410 = vunpack.c.l.b16 %v186
    %v411 = vunpack.c.l.b16 %v187
    %v412 = vunpack.c.l.b16 %v188
    %v413 = vunpack.c.l.b16 %v189
    %v414 = vunpack.c.l.b16 %v190
    %v415 = vunpack.c.l.b16 %v191
    %v416 = vunpack.c.l.b16 %v192
    %v417 = vunpack.c.l.b16 %v193
    %v418 = vunpack.c.l.b16 %v194
    %v419 = vunpack.c.l.b16 %v195
    %v420 = vunpack.c.l.b16 %v196
    %v421 = vunpack.c.l.b16 %v197
    %v422 = vunpack.c.l.b16 %v198
    %v423 = vunpack.c.l.b16 %v199
    %v424 = vunpack.c.l.b16 %v200
    %v425 = vpack.c.b16 %v394, %v393
    %v426 = vpack.c.b16 %v396, %v395
    %v427 = vpack.c.b16 %v398, %v397
    %v428 = vpack.c.b16 %v400, %v399
    %v429 = vpack.c.b16 %v402, %v401
    %v430 = vpack.c.b16 %v404, %v403
    %v431 = vpack.c.b16 %v406, %v405
    %v432 = vpack.c.b16 %v408, %v407
    %v433 = vpack.c.b16 %v410, %v409
    %v434 = vpack.c.b16 %v412, %v411
    %v435 = vpack.c.b16 %v414, %v413
    %v436 = vpack.c.b16 %v416, %v415
    %v437 = vpack.c.b16 %v418, %v417
    %v438 = vpack.c.b16 %v420, %v419
    %v439 = vpack.c.b16 %v422, %v421
    %v440 = vpack.c.b16 %v424, %v423
    %457 = vmatprep.subr.bf16.mxu0 0
    %458 = vmatpush1.bf16.msra.mxu0 %v425
    %459 = vmatprep.subr.bf16.mxu0 0
    %460 = vmatpush1.bf16.msra.mxu0 %v426
    %461 = vmatprep.subr.bf16.mxu0 0
    %462 = vmatpush1.bf16.msra.mxu0 %v427
    %463 = vmatprep.subr.bf16.mxu0 0
    %464 = vmatpush1.bf16.msra.mxu0 %v428
    %465 = vmatprep.subr.bf16.mxu0 0
    %466 = vmatpush1.bf16.msra.mxu0 %v429
    %467 = vmatprep.subr.bf16.mxu0 0
    %468 = vmatpush1.bf16.msra.mxu0 %v430
    %469 = vmatprep.subr.bf16.mxu0 0
    %470 = vmatpush1.bf16.msra.mxu0 %v431
    %471 = vmatprep.subr.bf16.mxu0 0
    %472 = vmatpush1.bf16.msra.mxu0 %v432
    %473 = vmatprep.subr.bf16.mxu0 0
    %474 = vmatpush1.bf16.msra.mxu0 %v433
    %475 = vmatprep.subr.bf16.mxu0 0
    %476 = vmatpush1.bf16.msra.mxu0 %v434
    %477 = vmatprep.subr.bf16.mxu0 0
    %478 = vmatpush1.bf16.msra.mxu0 %v435
    %479 = vmatprep.subr.bf16.mxu0 0
    %480 = vmatpush1.bf16.msra.mxu0 %v436
    %481 = vmatprep.subr.bf16.mxu0 0
    %482 = vmatpush1.bf16.msra.mxu0 %v437
    %483 = vmatprep.subr.bf16.mxu0 0
    %484 = vmatpush1.bf16.msra.mxu0 %v438
    %485 = vmatprep.subr.bf16.mxu0 0
    %486 = vmatpush1.bf16.msra.mxu0 %v439
    %487 = vmatprep.subr.bf16.mxu0 0
    %488 = vmatpush1.bf16.msra.mxu0 %v440
    %489 = vmatprep.mubr.bf16.mxu0 %v298
    %490 = vmatmul.mubr.bf16.gmra.mrb[0].mxu0 %v297
    %v491 = vpop.f32.mrb[0].mxu0
    %v492 = vadd.f32 0.0, %v491
    %v493 = vpop.f32.mrb[0].mxu0
    %v494 = vpop.f32.mrb[0].mxu0
    %v495 = vadd.f32 0.0, %v494
    %v496 = vpop.f32.mrb[0].mxu0
    %497 = vmatprep.mubr.bf16.mxu0 %v300
    %498 = vmatmul.mubr.bf16.gmra.mrb[0].mxu0 %v299
    %v499 = vpop.f32.mrb[0].mxu0
    %v500 = vadd.f32 0.0, %v499
    %v501 = vpop.f32.mrb[0].mxu0
    %v502 = vpop.f32.mrb[0].mxu0
    %v503 = vadd.f32 0.0, %v502
    %v504 = vpop.f32.mrb[0].mxu0
    %505 = vmatprep.mubr.bf16.mxu0 %v302
    %506 = vmatmul.mubr.bf16.gmra.mrb[0].mxu0 %v301
    %v507 = vpop.f32.mrb[0].mxu0
    %v508 = vadd.f32 0.0, %v507
    %v509 = vpop.f32.mrb[0].mxu0
    %v510 = vpop.f32.mrb[0].mxu0
    %v511 = vadd.f32 0.0, %v510
    %v512 = vpop.f32.mrb[0].mxu0
    %513 = vmatprep.mubr.bf16.mxu0 %v304
    %514 = vmatmul.mubr.bf16.gmra.mrb[0].mxu0 %v303
    %v515 = vpop.f32.mrb[0].mxu0
    %v516 = vadd.f32 0.0, %v515
    %v517 = vpop.f32.mrb[0].mxu0
    %v518 = vpop.f32.mrb[0].mxu0
    %v519 = vadd.f32 0.0, %v518
    %v520 = vpop.f32.mrb[0].mxu0
    %521 = vmatprep.mubr.bf16.mxu0 %v306
    %522 = vmatmul.mubr.bf16.gmra.mrb[0].mxu0 %v305
    %v523 = vpop.f32.mrb[0].mxu0
    %v524 = vadd.f32 0.0, %v523
    %v525 = vpop.f32.mrb[0].mxu0
    %v526 = vpop.f32.mrb[0].mxu0
    %v527 = vadd.f32 0.0, %v526
    %v528 = vpop.f32.mrb[0].mxu0
    %529 = vmatprep.mubr.bf16.mxu0 %v308
    %530 = vmatmul.mubr.bf16.gmra.mrb[0].mxu0 %v307
    %v531 = vpop.f32.mrb[0].mxu0
    %v532 = vadd.f32 0.0, %v531
    %v533 = vpop.f32.mrb[0].mxu0
    %v534 = vpop.f32.mrb[0].mxu0
    %v535 = vadd.f32 0.0, %v534
    %v536 = vpop.f32.mrb[0].mxu0
    %537 = vmatprep.mubr.bf16.mxu0 %v310
    %538 = vmatmul.mubr.bf16.gmra.mrb[0].mxu0 %v309
    %v539 = vpop.f32.mrb[0].mxu0
    %v540 = vadd.f32 0.0, %v539
    %v541 = vpop.f32.mrb[0].mxu0
    %v542 = vpop.f32.mrb[0].mxu0
    %v543 = vadd.f32 0.0, %v542
    %v544 = vpop.f32.mrb[0].mxu0
    %545 = vmatprep.mubr.bf16.mxu0 %v312
    %546 = vmatmul.mubr.bf16.gmra.mrb[0].mxu0 %v311
    %v547 = vpop.f32.mrb[0].mxu0
    %v548 = vadd.f32 0.0, %v547
    %v549 = vpop.f32.mrb[0].mxu0
    %v550 = vpop.f32.mrb[0].mxu0
    %v551 = vadd.f32 0.0, %v550
    %v552 = vpop.f32.mrb[0].mxu0
    %553 = vmatprep.mubr.bf16.mxu0 %v314
    %554 = vmatmul.mubr.bf16.gmra.mrb[0].mxu0 %v313
    %v555 = vpop.f32.mrb[0].mxu0
    %v556 = vadd.f32 0.0, %v555
    %v557 = vpop.f32.mrb[0].mxu0
    %v558 = vpop.f32.mrb[0].mxu0
    %v559 = vadd.f32 0.0, %v558
    %v560 = vpop.f32.mrb[0].mxu0
    %561 = vmatprep.mubr.bf16.mxu0 %v316
    %562 = vmatmul.mubr.bf16.gmra.mrb[0].mxu0 %v315
    %v563 = vpop.f32.mrb[0].mxu0
    %v564 = vadd.f32 0.0, %v563
    %v565 = vpop.f32.mrb[0].mxu0
    %v566 = vpop.f32.mrb[0].mxu0
    %v567 = vadd.f32 0.0, %v566
    %v568 = vpop.f32.mrb[0].mxu0
    %569 = vmatprep.mubr.bf16.mxu0 %v318
    %570 = vmatmul.mubr.bf16.gmra.mrb[0].mxu0 %v317
    %v571 = vpop.f32.mrb[0].mxu0
    %v572 = vadd.f32 0.0, %v571
    %v573 = vpop.f32.mrb[0].mxu0
    %v574 = vpop.f32.mrb[0].mxu0
    %v575 = vadd.f32 0.0, %v574
    %v576 = vpop.f32.mrb[0].mxu0
    %577 = vmatprep.mubr.bf16.mxu0 %v320
    %578 = vmatmul.mubr.bf16.gmra.mrb[0].mxu0 %v319
    %v579 = vpop.f32.mrb[0].mxu0
    %v580 = vadd.f32 0.0, %v579
    %v581 = vpop.f32.mrb[0].mxu0
    %v582 = vpop.f32.mrb[0].mxu0
    %v583 = vadd.f32 0.0, %v582
    %v584 = vpop.f32.mrb[0].mxu0
    %585 = vmatprep.mubr.bf16.mxu0 %v322
    %586 = vmatmul.mubr.bf16.gmra.mrb[0].mxu0 %v321
    %v587 = vpop.f32.mrb[0].mxu0
    %v588 = vadd.f32 0.0, %v587
    %v589 = vpop.f32.mrb[0].mxu0
    %v590 = vpop.f32.mrb[0].mxu0
    %v591 = vadd.f32 0.0, %v590
    %v592 = vpop.f32.mrb[0].mxu0
    %593 = vmatprep.mubr.bf16.mxu0 %v324
    %594 = vmatmul.mubr.bf16.gmra.mrb[0].mxu0 %v323
    %v595 = vpop.f32.mrb[0].mxu0
    %v596 = vadd.f32 0.0, %v595
    %v597 = vpop.f32.mrb[0].mxu0
    %v598 = vpop.f32.mrb[0].mxu0
    %v599 = vadd.f32 0.0, %v598
    %v600 = vpop.f32.mrb[0].mxu0
    %601 = vmatprep.mubr.bf16.mxu0 %v326
    %602 = vmatmul.mubr.bf16.gmra.mrb[0].mxu0 %v325
    %v603 = vpop.f32.mrb[0].mxu0
    %v604 = vadd.f32 0.0, %v603
    %v605 = vpop.f32.mrb[0].mxu0
    %v606 = vpop.f32.mrb[0].mxu0
    %v607 = vadd.f32 0.0, %v606
    %v608 = vpop.f32.mrb[0].mxu0
    %609 = vmatprep.mubr.bf16.mxu0 %v328
    %610 = vmatmul.mubr.bf16.gmra.mrb[0].mxu0 %v327
    %v611 = vpop.f32.mrb[0].mxu0
    %v612 = vadd.f32 0.0, %v611
    %v613 = vpop.f32.mrb[0].mxu0
    %v614 = vpop.f32.mrb[0].mxu0
    %v615 = vadd.f32 0.0, %v614
    %v616 = vpop.f32.mrb[0].mxu0
    %617 = vdwg.mxu0
    %v618 = vadd.f32 %v105, %v492
    %v619 = vadd.f32 %v106, %v495
    %v620 = vadd.f32 %v107, %v500
    %v621 = vadd.f32 %v108, %v503
    %v622 = vadd.f32 %v109, %v508
    %v623 = vadd.f32 %v110, %v511
    %v624 = vadd.f32 %v111, %v516
    %v625 = vadd.f32 %v112, %v519
    %v626 = vadd.f32 %v113, %v524
    %v627 = vadd.f32 %v114, %v527
    %v628 = vadd.f32 %v115, %v532
    %v629 = vadd.f32 %v116, %v535
    %v630 = vadd.f32 %v117, %v540
    %v631 = vadd.f32 %v118, %v543
    %v632 = vadd.f32 %v119, %v548
    %v633 = vadd.f32 %v120, %v551
    %v634 = vadd.f32 %v121, %v556
    %v635 = vadd.f32 %v122, %v559
    %v636 = vadd.f32 %v123, %v564
    %v637 = vadd.f32 %v124, %v567
    %v638 = vadd.f32 %v125, %v572
    %v639 = vadd.f32 %v126, %v575
    %v640 = vadd.f32 %v127, %v580
    %v641 = vadd.f32 %v128, %v583
    %v642 = vadd.f32 %v129, %v588
    %v643 = vadd.f32 %v130, %v591
    %v644 = vadd.f32 %v131, %v596
    %v645 = vadd.f32 %v132, %v599
    %v646 = vadd.f32 %v133, %v604
    %v647 = vadd.f32 %v134, %v607
    %v648 = vadd.f32 %v135, %v612
    %v649 = vadd.f32 %v136, %v615
    %650 = vst [vmem:[#allocation2] sm:$0xff] %v618
    %651 = vst [vmem:[#allocation2 + $0x8] sm:$0xff] %v619
    %652 = vst [vmem:[#allocation2 + $0x10] sm:$0xff] %v620
    %653 = vst [vmem:[#allocation2 + $0x18] sm:$0xff] %v621
    %654 = vst [vmem:[#allocation2 + $0x20] sm:$0xff] %v622
    %655 = vst [vmem:[#allocation2 + $0x28] sm:$0xff] %v623
    %656 = vst [vmem:[#allocation2 + $0x30] sm:$0xff] %v624
    %657 = vst [vmem:[#allocation2 + $0x38] sm:$0xff] %v625
    %658 = vst [vmem:[#allocation2 + $0x40] sm:$0xff] %v626
    %659 = vst [vmem:[#allocation2 + $0x48] sm:$0xff] %v627
    %660 = vst [vmem:[#allocation2 + $0x50] sm:$0xff] %v628
    %661 = vst [vmem:[#allocation2 + $0x58] sm:$0xff] %v629
    %662 = vst [vmem:[#allocation2 + $0x60] sm:$0xff] %v630
    %663 = vst [vmem:[#allocation2 + $0x68] sm:$0xff] %v631
    %664 = vst [vmem:[#allocation2 + $0x70] sm:$0xff] %v632
    %665 = vst [vmem:[#allocation2 + $0x78] sm:$0xff] %v633
    %666 = vst [vmem:[#allocation2 + $0x80] sm:$0xff] %v634
    %667 = vst [vmem:[#allocation2 + $0x88] sm:$0xff] %v635
    %668 = vst [vmem:[#allocation2 + $0x90] sm:$0xff] %v636
    %669 = vst [vmem:[#allocation2 + $0x98] sm:$0xff] %v637
    %670 = vst [vmem:[#allocation2 + $0xa0] sm:$0xff] %v638
    %671 = vst [vmem:[#allocation2 + $0xa8] sm:$0xff] %v639
    %672 = vst [vmem:[#allocation2 + $0xb0] sm:$0xff] %v640
    %673 = vst [vmem:[#allocation2 + $0xb8] sm:$0xff] %v641
    %674 = vst [vmem:[#allocation2 + $0xc0] sm:$0xff] %v642
    %675 = vst [vmem:[#allocation2 + $0xc8] sm:$0xff] %v643
    %676 = vst [vmem:[#allocation2 + $0xd0] sm:$0xff] %v644
    %677 = vst [vmem:[#allocation2 + $0xd8] sm:$0xff] %v645
    %678 = vst [vmem:[#allocation2 + $0xe0] sm:$0xff] %v646
    %679 = vst [vmem:[#allocation2 + $0xe8] sm:$0xff] %v647
    %680 = vst [vmem:[#allocation2 + $0xf0] sm:$0xff] %v648
    %681 = vst [vmem:[#allocation2 + $0xf8] sm:$0xff] %v649
    // Predicated region
    $region46: #{tpu_custom_call.1} parent=1 // pred_check
      %p682 = pneg %p69
    $region47: #{tpu_custom_call.1} parent=1 // pred_check_branch
      %684 = sbr.rel (%p682) target = $region49
    $region48: #{tpu_custom_call.1} parent=1 // pred_region
      %v685 = vld [vmem:[#allocation2] sm:$0xff]
      %v686 = vld [vmem:[#allocation2 + $0x8] sm:$0xff]
      %v687 = vld [vmem:[#allocation2 + $0x10] sm:$0xff]
      %v688 = vld [vmem:[#allocation2 + $0x18] sm:$0xff]
      %v689 = vld [vmem:[#allocation2 + $0x20] sm:$0xff]
      %v690 = vld [vmem:[#allocation2 + $0x28] sm:$0xff]
      %v691 = vld [vmem:[#allocation2 + $0x30] sm:$0xff]
      %v692 = vld [vmem:[#allocation2 + $0x38] sm:$0xff]
      %v693 = vld [vmem:[#allocation2 + $0x40] sm:$0xff]
      %v694 = vld [vmem:[#allocation2 + $0x48] sm:$0xff]
      %v695 = vld [vmem:[#allocation2 + $0x50] sm:$0xff]
      %v696 = vld [vmem:[#allocation2 + $0x58] sm:$0xff]
      %v697 = vld [vmem:[#allocation2 + $0x60] sm:$0xff]
      %v698 = vld [vmem:[#allocation2 + $0x68] sm:$0xff]
      %v699 = vld [vmem:[#allocation2 + $0x70] sm:$0xff]
      %v700 = vld [vmem:[#allocation2 + $0x78] sm:$0xff]
      %v701 = vld [vmem:[#allocation2 + $0x80] sm:$0xff]
      %v702 = vld [vmem:[#allocation2 + $0x88] sm:$0xff]
      %v703 = vld [vmem:[#allocation2 + $0x90] sm:$0xff]
      %v704 = vld [vmem:[#allocation2 + $0x98] sm:$0xff]
      %v705 = vld [vmem:[#allocation2 + $0xa0] sm:$0xff]
      %v706 = vld [vmem:[#allocation2 + $0xa8] sm:$0xff]
      %v707 = vld [vmem:[#allocation2 + $0xb0] sm:$0xff]
      %v708 = vld [vmem:[#allocation2 + $0xb8] sm:$0xff]
      %v709 = vld [vmem:[#allocation2 + $0xc0] sm:$0xff]
      %v710 = vld [vmem:[#allocation2 + $0xc8] sm:$0xff]
      %v711 = vld [vmem:[#allocation2 + $0xd0] sm:$0xff]
      %v712 = vld [vmem:[#allocation2 + $0xd8] sm:$0xff]
      %v713 = vld [vmem:[#allocation2 + $0xe0] sm:$0xff]
      %v714 = vld [vmem:[#allocation2 + $0xe8] sm:$0xff]
      %v715 = vld [vmem:[#allocation2 + $0xf0] sm:$0xff]
      %v716 = vld [vmem:[#allocation2 + $0xf8] sm:$0xff]
      %v717 = vld [vmem:[%s2] sm:$0xff]
      %v718 = vld [vmem:[%s2 + $0x8] sm:$0xff]
      %v719 = vld [vmem:[%s2 + $0x10] sm:$0xff]
      %v720 = vld [vmem:[%s2 + $0x18] sm:$0xff]
      %v721 = vld [vmem:[%s2 + $0x20] sm:$0xff]
      %v722 = vld [vmem:[%s2 + $0x28] sm:$0xff]
      %v723 = vld [vmem:[%s2 + $0x30] sm:$0xff]
      %v724 = vld [vmem:[%s2 + $0x38] sm:$0xff]
      %v725 = vld [vmem:[%s2 + $0x40] sm:$0xff]
      %v726 = vld [vmem:[%s2 + $0x48] sm:$0xff]
      %v727 = vld [vmem:[%s2 + $0x50] sm:$0xff]
      %v728 = vld [vmem:[%s2 + $0x58] sm:$0xff]
      %v729 = vld [vmem:[%s2 + $0x60] sm:$0xff]
      %v730 = vld [vmem:[%s2 + $0x68] sm:$0xff]
      %v731 = vld [vmem:[%s2 + $0x70] sm:$0xff]
      %v732 = vld [vmem:[%s2 + $0x78] sm:$0xff]
      %v733 = vld [vmem:[%s2 + $0x80] sm:$0xff]
      %v734 = vld [vmem:[%s2 + $0x88] sm:$0xff]
      %v735 = vld [vmem:[%s2 + $0x90] sm:$0xff]
      %v736 = vld [vmem:[%s2 + $0x98] sm:$0xff]
      %v737 = vld [vmem:[%s2 + $0xa0] sm:$0xff]
      %v738 = vld [vmem:[%s2 + $0xa8] sm:$0xff]
      %v739 = vld [vmem:[%s2 + $0xb0] sm:$0xff]
      %v740 = vld [vmem:[%s2 + $0xb8] sm:$0xff]
      %v741 = vld [vmem:[%s2 + $0xc0] sm:$0xff]
      %v742 = vld [vmem:[%s2 + $0xc8] sm:$0xff]
      %v743 = vld [vmem:[%s2 + $0xd0] sm:$0xff]
      %v744 = vld [vmem:[%s2 + $0xd8] sm:$0xff]
      %v745 = vld [vmem:[%s2 + $0xe0] sm:$0xff]
      %v746 = vld [vmem:[%s2 + $0xe8] sm:$0xff]
      %v747 = vld [vmem:[%s2 + $0xf0] sm:$0xff]
      %v748 = vld [vmem:[%s2 + $0xf8] sm:$0xff]
      %750 = vset.pattern.permute.xlu0 0
      %751 = vperm.xlu0 %750, %v717
      %v752 = vpop.permute.xlu0 %751
      %755 = vset.pattern.permute.xlu0 0
      %756 = vperm.xlu0 %755, %v718
      %v757 = vpop.permute.xlu0 %756
      %760 = vset.pattern.permute.xlu0 0
      %761 = vperm.xlu0 %760, %v719
      %v762 = vpop.permute.xlu0 %761
      %765 = vset.pattern.permute.xlu0 0
      %766 = vperm.xlu0 %765, %v720
      %v767 = vpop.permute.xlu0 %766
      %770 = vset.pattern.permute.xlu0 0
      %771 = vperm.xlu0 %770, %v721
      %v772 = vpop.permute.xlu0 %771
      %775 = vset.pattern.permute.xlu0 0
      %776 = vperm.xlu0 %775, %v722
      %v777 = vpop.permute.xlu0 %776
      %780 = vset.pattern.permute.xlu0 0
      %781 = vperm.xlu0 %780, %v723
      %v782 = vpop.permute.xlu0 %781
      %785 = vset.pattern.permute.xlu0 0
      %786 = vperm.xlu0 %785, %v724
      %v787 = vpop.permute.xlu0 %786
      %790 = vset.pattern.permute.xlu0 0
      %791 = vperm.xlu0 %790, %v725
      %v792 = vpop.permute.xlu0 %791
      %795 = vset.pattern.permute.xlu0 0
      %796 = vperm.xlu0 %795, %v726
      %v797 = vpop.permute.xlu0 %796
      %800 = vset.pattern.permute.xlu0 0
      %801 = vperm.xlu0 %800, %v727
      %v802 = vpop.permute.xlu0 %801
      %805 = vset.pattern.permute.xlu0 0
      %806 = vperm.xlu0 %805, %v728
      %v807 = vpop.permute.xlu0 %806
      %810 = vset.pattern.permute.xlu0 0
      %811 = vperm.xlu0 %810, %v729
      %v812 = vpop.permute.xlu0 %811
      %815 = vset.pattern.permute.xlu0 0
      %816 = vperm.xlu0 %815, %v730
      %v817 = vpop.permute.xlu0 %816
      %820 = vset.pattern.permute.xlu0 0
      %821 = vperm.xlu0 %820, %v731
      %v822 = vpop.permute.xlu0 %821
      %825 = vset.pattern.permute.xlu0 0
      %826 = vperm.xlu0 %825, %v732
      %v827 = vpop.permute.xlu0 %826
      %830 = vset.pattern.permute.xlu0 0
      %831 = vperm.xlu0 %830, %v733
      %v832 = vpop.permute.xlu0 %831
      %835 = vset.pattern.permute.xlu0 0
      %836 = vperm.xlu0 %835, %v734
      %v837 = vpop.permute.xlu0 %836
      %840 = vset.pattern.permute.xlu0 0
      %841 = vperm.xlu0 %840, %v735
      %v842 = vpop.permute.xlu0 %841
      %845 = vset.pattern.permute.xlu0 0
      %846 = vperm.xlu0 %845, %v736
      %v847 = vpop.permute.xlu0 %846
      %850 = vset.pattern.permute.xlu0 0
      %851 = vperm.xlu0 %850, %v737
      %v852 = vpop.permute.xlu0 %851
      %855 = vset.pattern.permute.xlu0 0
      %856 = vperm.xlu0 %855, %v738
      %v857 = vpop.permute.xlu0 %856
      %860 = vset.pattern.permute.xlu0 0
      %861 = vperm.xlu0 %860, %v739
      %v862 = vpop.permute.xlu0 %861
      %865 = vset.pattern.permute.xlu0 0
      %866 = vperm.xlu0 %865, %v740
      %v867 = vpop.permute.xlu0 %866
      %870 = vset.pattern.permute.xlu0 0
      %871 = vperm.xlu0 %870, %v741
      %v872 = vpop.permute.xlu0 %871
      %875 = vset.pattern.permute.xlu0 0
      %876 = vperm.xlu0 %875, %v742
      %v877 = vpop.permute.xlu0 %876
      %880 = vset.pattern.permute.xlu0 0
      %881 = vperm.xlu0 %880, %v743
      %v882 = vpop.permute.xlu0 %881
      %885 = vset.pattern.permute.xlu0 0
      %886 = vperm.xlu0 %885, %v744
      %v887 = vpop.permute.xlu0 %886
      %890 = vset.pattern.permute.xlu0 0
      %891 = vperm.xlu0 %890, %v745
      %v892 = vpop.permute.xlu0 %891
      %895 = vset.pattern.permute.xlu0 0
      %896 = vperm.xlu0 %895, %v746
      %v897 = vpop.permute.xlu0 %896
      %900 = vset.pattern.permute.xlu0 0
      %901 = vperm.xlu0 %900, %v747
      %v902 = vpop.permute.xlu0 %901
      %905 = vset.pattern.permute.xlu0 0
      %906 = vperm.xlu0 %905, %v748
      %v907 = vpop.permute.xlu0 %906
      %v909 = vmul.f32 %v685, %v752
      %v910 = vmul.f32 %v686, %v757
      %v911 = vmul.f32 %v687, %v762
      %v912 = vmul.f32 %v688, %v767
      %v913 = vmul.f32 %v689, %v772
      %v914 = vmul.f32 %v690, %v777
      %v915 = vmul.f32 %v691, %v782
      %v916 = vmul.f32 %v692, %v787
      %v917 = vmul.f32 %v693, %v792
      %v918 = vmul.f32 %v694, %v797
      %v919 = vmul.f32 %v695, %v802
      %v920 = vmul.f32 %v696, %v807
      %v921 = vmul.f32 %v697, %v812
      %v922 = vmul.f32 %v698, %v817
      %v923 = vmul.f32 %v699, %v822
      %v924 = vmul.f32 %v700, %v827
      %v925 = vmul.f32 %v701, %v832
      %v926 = vmul.f32 %v702, %v837
      %v927 = vmul.f32 %v703, %v842
      %v928 = vmul.f32 %v704, %v847
      %v929 = vmul.f32 %v705, %v852
      %v930 = vmul.f32 %v706, %v857
      %v931 = vmul.f32 %v707, %v862
      %v932 = vmul.f32 %v708, %v867
      %v933 = vmul.f32 %v709, %v872
      %v934 = vmul.f32 %v710, %v877
      %v935 = vmul.f32 %v711, %v882
      %v936 = vmul.f32 %v712, %v887
      %v937 = vmul.f32 %v713, %v892
      %v938 = vmul.f32 %v714, %v897
      %v939 = vmul.f32 %v715, %v902
      %v940 = vmul.f32 %v716, %v907
      %v941 = vpack.c.bf16 %v910, %v909
      %v942 = vpack.c.bf16 %v912, %v911
      %v943 = vpack.c.bf16 %v914, %v913
      %v944 = vpack.c.bf16 %v916, %v915
      %v945 = vpack.c.bf16 %v918, %v917
      %v946 = vpack.c.bf16 %v920, %v919
      %v947 = vpack.c.bf16 %v922, %v921
      %v948 = vpack.c.bf16 %v924, %v923
      %v949 = vpack.c.bf16 %v926, %v925
      %v950 = vpack.c.bf16 %v928, %v927
      %v951 = vpack.c.bf16 %v930, %v929
      %v952 = vpack.c.bf16 %v932, %v931
      %v953 = vpack.c.bf16 %v934, %v933
      %v954 = vpack.c.bf16 %v936, %v935
      %v955 = vpack.c.bf16 %v938, %v937
      %v956 = vpack.c.bf16 %v940, %v939
      %v957 = vld [vmem:[#allocation6] sm:$0xf]
      %v958 = vld [vmem:[#allocation6 + $0x4] sm:$0xf]
      %v959 = vld [vmem:[#allocation6 + $0x8] sm:$0xf]
      %v960 = vld [vmem:[#allocation6 + $0xc] sm:$0xf]
      %v961 = vld [vmem:[#allocation6 + $0x10] sm:$0xf]
      %v962 = vld [vmem:[#allocation6 + $0x14] sm:$0xf]
      %v963 = vld [vmem:[#allocation6 + $0x18] sm:$0xf]
      %v964 = vld [vmem:[#allocation6 + $0x1c] sm:$0xf]
      %v965 = vld [vmem:[#allocation6 + $0x20] sm:$0xf]
      %v966 = vld [vmem:[#allocation6 + $0x24] sm:$0xf]
      %v967 = vld [vmem:[#allocation6 + $0x28] sm:$0xf]
      %v968 = vld [vmem:[#allocation6 + $0x2c] sm:$0xf]
      %v969 = vld [vmem:[#allocation6 + $0x30] sm:$0xf]
      %v970 = vld [vmem:[#allocation6 + $0x34] sm:$0xf]
      %v971 = vld [vmem:[#allocation6 + $0x38] sm:$0xf]
      %v972 = vld [vmem:[#allocation6 + $0x3c] sm:$0xf]
      %v973 = vld [vmem:[%s4] sm:$0x1]
      %v975 = vlaneseq
      %v976 = vshrl.u32 %v975, 7
      %v977 = vsub.s32 0, %v976
      %v978 = vrot.slane %v973, %v977
      %v996 = vunpack.c.l.b16 %v957
      %v997 = vunpack.c.l.b16 %v958
      %v998 = vunpack.c.l.b16 %v959
      %v999 = vunpack.c.l.b16 %v960
      %v1000 = vunpack.c.l.b16 %v961
      %v1001 = vunpack.c.l.b16 %v962
      %v1002 = vunpack.c.l.b16 %v963
      %v1003 = vunpack.c.l.b16 %v964
      %v1004 = vunpack.c.l.b16 %v965
      %v1005 = vunpack.c.l.b16 %v966
      %v1006 = vunpack.c.l.b16 %v967
      %v1007 = vunpack.c.l.b16 %v968
      %v1008 = vunpack.c.l.b16 %v969
      %v1009 = vunpack.c.l.b16 %v970
      %v1010 = vunpack.c.l.b16 %v971
      %v1011 = vunpack.c.l.b16 %v972
      %v1012 = vpack.c.b16 %v997, %v996
      %v1013 = vpack.c.b16 %v999, %v998
      %v1014 = vpack.c.b16 %v1001, %v1000
      %v1015 = vpack.c.b16 %v1003, %v1002
      %v1016 = vpack.c.b16 %v1005, %v1004
      %v1017 = vpack.c.b16 %v1007, %v1006
      %v1018 = vpack.c.b16 %v1009, %v1008
      %v1019 = vpack.c.b16 %v1011, %v1010
      %1028 = vmatprep.subr.bf16.mxu0 0
      %1029 = vmatpush1.bf16.msra.mxu0 %v1012
      %1030 = vmatprep.subr.bf16.mxu0 0
      %1031 = vmatpush1.bf16.msra.mxu0 %v1013
      %1032 = vmatprep.subr.bf16.mxu0 0
      %1033 = vmatpush1.bf16.msra.mxu0 %v1014
      %1034 = vmatprep.subr.bf16.mxu0 0
      %1035 = vmatpush1.bf16.msra.mxu0 %v1015
      %1036 = vmatprep.subr.bf16.mxu0 0
      %1037 = vmatpush1.bf16.msra.mxu0 %v1016
      %1038 = vmatprep.subr.bf16.mxu0 0
      %1039 = vmatpush1.bf16.msra.mxu0 %v1017
      %1040 = vmatprep.subr.bf16.mxu0 0
      %1041 = vmatpush1.bf16.msra.mxu0 %v1018
      %1042 = vmatprep.subr.bf16.mxu0 0
      %1043 = vmatpush1.bf16.msra.mxu0 %v1019
      %1044 = vmatprep.subr.bf16.mxu0 0
      %1045 = vmatpush1.bf16.msra.mxu0 0
      %1046 = vmatprep.subr.bf16.mxu0 0
      %1047 = vmatpush1.bf16.msra.mxu0 0
      %1048 = vmatprep.subr.bf16.mxu0 0
      %1049 = vmatpush1.bf16.msra.mxu0 0
      %1050 = vmatprep.subr.bf16.mxu0 0
      %1051 = vmatpush1.bf16.msra.mxu0 0
      %1052 = vmatprep.subr.bf16.mxu0 0
      %1053 = vmatpush1.bf16.msra.mxu0 0
      %1054 = vmatprep.subr.bf16.mxu0 0
      %1055 = vmatpush1.bf16.msra.mxu0 0
      %1056 = vmatprep.subr.bf16.mxu0 0
      %1057 = vmatpush1.bf16.msra.mxu0 0
      %1058 = vmatprep.subr.bf16.mxu0 0
      %1059 = vmatpush1.bf16.msra.mxu0 0
      %1060 = vmatprep.mubr.bf16.mxu0 0
      %1061 = vmatmul.mubr.bf16.gmra.mrb[0].mxu0 %v941
      %v1062 = vpop.f32.mrb[0].mxu0
      %v1063 = vadd.f32 %v978, %v1062
      %v1064 = vpop.f32.mrb[0].mxu0
      %v1065 = vpop.f32.mrb[0].mxu0
      %v1066 = vadd.f32 %v978, %v1065
      %v1067 = vpop.f32.mrb[0].mxu0
      %1068 = vmatprep.mubr.bf16.mxu0 0
      %1069 = vmatmul.mubr.bf16.gmra.mrb[0].mxu0 %v942
      %v1070 = vpop.f32.mrb[0].mxu0
      %v1071 = vadd.f32 %v978, %v1070
      %v1072 = vpop.f32.mrb[0].mxu0
      %v1073 = vpop.f32.mrb[0].mxu0
      %v1074 = vadd.f32 %v978, %v1073
      %v1075 = vpop.f32.mrb[0].mxu0
      %1076 = vmatprep.mubr.bf16.mxu0 0
      %1077 = vmatmul.mubr.bf16.gmra.mrb[0].mxu0 %v943
      %v1078 = vpop.f32.mrb[0].mxu0
      %v1079 = vadd.f32 %v978, %v1078
      %v1080 = vpop.f32.mrb[0].mxu0
      %v1081 = vpop.f32.mrb[0].mxu0
      %v1082 = vadd.f32 %v978, %v1081
      %v1083 = vpop.f32.mrb[0].mxu0
      %1084 = vmatprep.mubr.bf16.mxu0 0
      %1085 = vmatmul.mubr.bf16.gmra.mrb[0].mxu0 %v944
      %v1086 = vpop.f32.mrb[0].mxu0
      %v1087 = vadd.f32 %v978, %v1086
      %v1088 = vpop.f32.mrb[0].mxu0
      %v1089 = vpop.f32.mrb[0].mxu0
      %v1090 = vadd.f32 %v978, %v1089
      %v1091 = vpop.f32.mrb[0].mxu0
      %1092 = vmatprep.mubr.bf16.mxu0 0
      %1093 = vmatmul.mubr.bf16.gmra.mrb[0].mxu0 %v945
      %v1094 = vpop.f32.mrb[0].mxu0
      %v1095 = vadd.f32 %v978, %v1094
      %v1096 = vpop.f32.mrb[0].mxu0
      %v1097 = vpop.f32.mrb[0].mxu0
      %v1098 = vadd.f32 %v978, %v1097
      %v1099 = vpop.f32.mrb[0].mxu0
      %1100 = vmatprep.mubr.bf16.mxu0 0
      %1101 = vmatmul.mubr.bf16.gmra.mrb[0].mxu0 %v946
      %v1102 = vpop.f32.mrb[0].mxu0
      %v1103 = vadd.f32 %v978, %v1102
      %v1104 = vpop.f32.mrb[0].mxu0
      %v1105 = vpop.f32.mrb[0].mxu0
      %v1106 = vadd.f32 %v978, %v1105
      %v1107 = vpop.f32.mrb[0].mxu0
      %1108 = vmatprep.mubr.bf16.mxu0 0
      %1109 = vmatmul.mubr.bf16.gmra.mrb[0].mxu0 %v947
      %v1110 = vpop.f32.mrb[0].mxu0
      %v1111 = vadd.f32 %v978, %v1110
      %v1112 = vpop.f32.mrb[0].mxu0
      %v1113 = vpop.f32.mrb[0].mxu0
      %v1114 = vadd.f32 %v978, %v1113
      %v1115 = vpop.f32.mrb[0].mxu0
      %1116 = vmatprep.mubr.bf16.mxu0 0
      %1117 = vmatmul.mubr.bf16.gmra.mrb[0].mxu0 %v948
      %v1118 = vpop.f32.mrb[0].mxu0
      %v1119 = vadd.f32 %v978, %v1118
      %v1120 = vpop.f32.mrb[0].mxu0
      %v1121 = vpop.f32.mrb[0].mxu0
      %v1122 = vadd.f32 %v978, %v1121
      %v1123 = vpop.f32.mrb[0].mxu0
      %1124 = vmatprep.mubr.bf16.mxu0 0
      %1125 = vmatmul.mubr.bf16.gmra.mrb[0].mxu0 %v949
      %v1126 = vpop.f32.mrb[0].mxu0
      %v1127 = vadd.f32 %v978, %v1126
      %v1128 = vpop.f32.mrb[0].mxu0
      %v1129 = vpop.f32.mrb[0].mxu0
      %v1130 = vadd.f32 %v978, %v1129
      %v1131 = vpop.f32.mrb[0].mxu0
      %1132 = vmatprep.mubr.bf16.mxu0 0
      %1133 = vmatmul.mubr.bf16.gmra.mrb[0].mxu0 %v950
      %v1134 = vpop.f32.mrb[0].mxu0
      %v1135 = vadd.f32 %v978, %v1134
      %v1136 = vpop.f32.mrb[0].mxu0
      %v1137 = vpop.f32.mrb[0].mxu0
      %v1138 = vadd.f32 %v978, %v1137
      %v1139 = vpop.f32.mrb[0].mxu0
      %1140 = vmatprep.mubr.bf16.mxu0 0
      %1141 = vmatmul.mubr.bf16.gmra.mrb[0].mxu0 %v951
      %v1142 = vpop.f32.mrb[0].mxu0
      %v1143 = vadd.f32 %v978, %v1142
      %v1144 = vpop.f32.mrb[0].mxu0
      %v1145 = vpop.f32.mrb[0].mxu0
      %v1146 = vadd.f32 %v978, %v1145
      %v1147 = vpop.f32.mrb[0].mxu0
      %1148 = vmatprep.mubr.bf16.mxu0 0
      %1149 = vmatmul.mubr.bf16.gmra.mrb[0].mxu0 %v952
      %v1150 = vpop.f32.mrb[0].mxu0
      %v1151 = vadd.f32 %v978, %v1150
      %v1152 = vpop.f32.mrb[0].mxu0
      %v1153 = vpop.f32.mrb[0].mxu0
      %v1154 = vadd.f32 %v978, %v1153
      %v1155 = vpop.f32.mrb[0].mxu0
      %1156 = vmatprep.mubr.bf16.mxu0 0
      %1157 = vmatmul.mubr.bf16.gmra.mrb[0].mxu0 %v953
      %v1158 = vpop.f32.mrb[0].mxu0
      %v1159 = vadd.f32 %v978, %v1158
      %v1160 = vpop.f32.mrb[0].mxu0
      %v1161 = vpop.f32.mrb[0].mxu0
      %v1162 = vadd.f32 %v978, %v1161
      %v1163 = vpop.f32.mrb[0].mxu0
      %1164 = vmatprep.mubr.bf16.mxu0 0
      %1165 = vmatmul.mubr.bf16.gmra.mrb[0].mxu0 %v954
      %v1166 = vpop.f32.mrb[0].mxu0
      %v1167 = vadd.f32 %v978, %v1166
      %v1168 = vpop.f32.mrb[0].mxu0
      %v1169 = vpop.f32.mrb[0].mxu0
      %v1170 = vadd.f32 %v978, %v1169
      %v1171 = vpop.f32.mrb[0].mxu0
      %1172 = vmatprep.mubr.bf16.mxu0 0
      %1173 = vmatmul.mubr.bf16.gmra.mrb[0].mxu0 %v955
      %v1174 = vpop.f32.mrb[0].mxu0
      %v1175 = vadd.f32 %v978, %v1174
      %v1176 = vpop.f32.mrb[0].mxu0
      %v1177 = vpop.f32.mrb[0].mxu0
      %v1178 = vadd.f32 %v978, %v1177
      %v1179 = vpop.f32.mrb[0].mxu0
      %1180 = vmatprep.mubr.bf16.mxu0 0
      %1181 = vmatmul.mubr.bf16.gmra.mrb[0].mxu0 %v956
      %v1182 = vpop.f32.mrb[0].mxu0
      %v1183 = vadd.f32 %v978, %v1182
      %v1184 = vpop.f32.mrb[0].mxu0
      %v1185 = vpop.f32.mrb[0].mxu0
      %v1186 = vadd.f32 %v978, %v1185
      %v1187 = vpop.f32.mrb[0].mxu0
      %1188 = vdwg.mxu0
      %v1189 = vmax.f32 %v1063, 0.0
      %v1190 = vmax.f32 %v1066, 0.0
      %v1191 = vmax.f32 %v1071, 0.0
      %v1192 = vmax.f32 %v1074, 0.0
      %v1193 = vmax.f32 %v1079, 0.0
      %v1194 = vmax.f32 %v1082, 0.0
      %v1195 = vmax.f32 %v1087, 0.0
      %v1196 = vmax.f32 %v1090, 0.0
      %v1197 = vmax.f32 %v1095, 0.0
      %v1198 = vmax.f32 %v1098, 0.0
      %v1199 = vmax.f32 %v1103, 0.0
      %v1200 = vmax.f32 %v1106, 0.0
      %v1201 = vmax.f32 %v1111, 0.0
      %v1202 = vmax.f32 %v1114, 0.0
      %v1203 = vmax.f32 %v1119, 0.0
      %v1204 = vmax.f32 %v1122, 0.0
      %v1205 = vmax.f32 %v1127, 0.0
      %v1206 = vmax.f32 %v1130, 0.0
      %v1207 = vmax.f32 %v1135, 0.0
      %v1208 = vmax.f32 %v1138, 0.0
      %v1209 = vmax.f32 %v1143, 0.0
      %v1210 = vmax.f32 %v1146, 0.0
      %v1211 = vmax.f32 %v1151, 0.0
      %v1212 = vmax.f32 %v1154, 0.0
      %v1213 = vmax.f32 %v1159, 0.0
      %v1214 = vmax.f32 %v1162, 0.0
      %v1215 = vmax.f32 %v1167, 0.0
      %v1216 = vmax.f32 %v1170, 0.0
      %v1217 = vmax.f32 %v1175, 0.0
      %v1218 = vmax.f32 %v1178, 0.0
      %v1219 = vmax.f32 %v1183, 0.0
      %v1220 = vmax.f32 %v1186, 0.0
      %v1221 = vpack.c.bf16 %v1190, %v1189
      %v1222 = vpack.c.bf16 %v1192, %v1191
      %v1223 = vpack.c.bf16 %v1194, %v1193
      %v1224 = vpack.c.bf16 %v1196, %v1195
      %v1225 = vpack.c.bf16 %v1198, %v1197
      %v1226 = vpack.c.bf16 %v1200, %v1199
      %v1227 = vpack.c.bf16 %v1202, %v1201
      %v1228 = vpack.c.bf16 %v1204, %v1203
      %v1229 = vpack.c.bf16 %v1206, %v1205
      %v1230 = vpack.c.bf16 %v1208, %v1207
      %v1231 = vpack.c.bf16 %v1210, %v1209
      %v1232 = vpack.c.bf16 %v1212, %v1211
      %v1233 = vpack.c.bf16 %v1214, %v1213
      %v1234 = vpack.c.bf16 %v1216, %v1215
      %v1235 = vpack.c.bf16 %v1218, %v1217
      %v1236 = vpack.c.bf16 %v1220, %v1219
      %v1237 = vld [vmem:[#allocation8] sm:$0xf]
      %v1238 = vld [vmem:[#allocation8 + $0x4] sm:$0xf]
      %v1239 = vld [vmem:[#allocation8 + $0x8] sm:$0xf]
      %v1240 = vld [vmem:[#allocation8 + $0xc] sm:$0xf]
      %v1241 = vld [vmem:[#allocation8 + $0x10] sm:$0xf]
      %v1242 = vld [vmem:[#allocation8 + $0x14] sm:$0xf]
      %v1243 = vld [vmem:[#allocation8 + $0x18] sm:$0xf]
      %v1244 = vld [vmem:[#allocation8 + $0x1c] sm:$0xf]
      %v1245 = vld [vmem:[#allocation8 + $0x20] sm:$0xf]
      %v1246 = vld [vmem:[#allocation8 + $0x24] sm:$0xf]
      %v1247 = vld [vmem:[#allocation8 + $0x28] sm:$0xf]
      %v1248 = vld [vmem:[#allocation8 + $0x2c] sm:$0xf]
      %v1249 = vld [vmem:[#allocation8 + $0x30] sm:$0xf]
      %v1250 = vld [vmem:[#allocation8 + $0x34] sm:$0xf]
      %v1251 = vld [vmem:[#allocation8 + $0x38] sm:$0xf]
      %v1252 = vld [vmem:[#allocation8 + $0x3c] sm:$0xf]
      %v1253 = vld [vmem:[%s6] sm:$0x1]
      %v1255 = vlaneseq
      %v1256 = vshrl.u32 %v1255, 7
      %v1257 = vsub.s32 0, %v1256
      %v1258 = vrot.slane %v1253, %v1257
      %v1276 = vunpack.c.l.b16 %v1237
      %v1277 = vunpack.c.l.b16 %v1238
      %v1278 = vunpack.c.l.b16 %v1239
      %v1279 = vunpack.c.l.b16 %v1240
      %v1280 = vunpack.c.l.b16 %v1241
      %v1281 = vunpack.c.l.b16 %v1242
      %v1282 = vunpack.c.l.b16 %v1243
      %v1283 = vunpack.c.l.b16 %v1244
      %v1284 = vunpack.c.l.b16 %v1245
      %v1285 = vunpack.c.l.b16 %v1246
      %v1286 = vunpack.c.l.b16 %v1247
      %v1287 = vunpack.c.l.b16 %v1248
      %v1288 = vunpack.c.l.b16 %v1249
      %v1289 = vunpack.c.l.b16 %v1250
      %v1290 = vunpack.c.l.b16 %v1251
      %v1291 = vunpack.c.l.b16 %v1252
      %v1292 = vpack.c.b16 %v1277, %v1276
      %v1293 = vpack.c.b16 %v1279, %v1278
      %v1294 = vpack.c.b16 %v1281, %v1280
      %v1295 = vpack.c.b16 %v1283, %v1282
      %v1296 = vpack.c.b16 %v1285, %v1284
      %v1297 = vpack.c.b16 %v1287, %v1286
      %v1298 = vpack.c.b16 %v1289, %v1288
      %v1299 = vpack.c.b16 %v1291, %v1290
      %1308 = vmatprep.subr.bf16.mxu0 0
      %1309 = vmatpush1.bf16.msra.mxu0 %v1292
      %1310 = vmatprep.subr.bf16.mxu0 0
      %1311 = vmatpush1.bf16.msra.mxu0 %v1293
      %1312 = vmatprep.subr.bf16.mxu0 0
      %1313 = vmatpush1.bf16.msra.mxu0 %v1294
      %1314 = vmatprep.subr.bf16.mxu0 0
      %1315 = vmatpush1.bf16.msra.mxu0 %v1295
      %1316 = vmatprep.subr.bf16.mxu0 0
      %1317 = vmatpush1.bf16.msra.mxu0 %v1296
      %1318 = vmatprep.subr.bf16.mxu0 0
      %1319 = vmatpush1.bf16.msra.mxu0 %v1297
      %1320 = vmatprep.subr.bf16.mxu0 0
      %1321 = vmatpush1.bf16.msra.mxu0 %v1298
      %1322 = vmatprep.subr.bf16.mxu0 0
      %1323 = vmatpush1.bf16.msra.mxu0 %v1299
      %1324 = vmatprep.subr.bf16.mxu0 0
      %1325 = vmatpush1.bf16.msra.mxu0 0
      %1326 = vmatprep.subr.bf16.mxu0 0
      %1327 = vmatpush1.bf16.msra.mxu0 0
      %1328 = vmatprep.subr.bf16.mxu0 0
      %1329 = vmatpush1.bf16.msra.mxu0 0
      %1330 = vmatprep.subr.bf16.mxu0 0
      %1331 = vmatpush1.bf16.msra.mxu0 0
      %1332 = vmatprep.subr.bf16.mxu0 0
      %1333 = vmatpush1.bf16.msra.mxu0 0
      %1334 = vmatprep.subr.bf16.mxu0 0
      %1335 = vmatpush1.bf16.msra.mxu0 0
      %1336 = vmatprep.subr.bf16.mxu0 0
      %1337 = vmatpush1.bf16.msra.mxu0 0
      %1338 = vmatprep.subr.bf16.mxu0 0
      %1339 = vmatpush1.bf16.msra.mxu0 0
      %1340 = vmatprep.mubr.bf16.mxu0 0
      %1341 = vmatmul.mubr.bf16.gmra.mrb[0].mxu0 %v1221
      %v1342 = vpop.f32.mrb[0].mxu0
      %v1343 = vadd.f32 %v1258, %v1342
      %v1344 = vpop.f32.mrb[0].mxu0
      %v1345 = vpop.f32.mrb[0].mxu0
      %v1346 = vadd.f32 %v1258, %v1345
      %v1347 = vpop.f32.mrb[0].mxu0
      %1348 = vmatprep.mubr.bf16.mxu0 0
      %1349 = vmatmul.mubr.bf16.gmra.mrb[0].mxu0 %v1222
      %v1350 = vpop.f32.mrb[0].mxu0
      %v1351 = vadd.f32 %v1258, %v1350
      %v1352 = vpop.f32.mrb[0].mxu0
      %v1353 = vpop.f32.mrb[0].mxu0
      %v1354 = vadd.f32 %v1258, %v1353
      %v1355 = vpop.f32.mrb[0].mxu0
      %1356 = vmatprep.mubr.bf16.mxu0 0
      %1357 = vmatmul.mubr.bf16.gmra.mrb[0].mxu0 %v1223
      %v1358 = vpop.f32.mrb[0].mxu0
      %v1359 = vadd.f32 %v1258, %v1358
      %v1360 = vpop.f32.mrb[0].mxu0
      %v1361 = vpop.f32.mrb[0].mxu0
      %v1362 = vadd.f32 %v1258, %v1361
      %v1363 = vpop.f32.mrb[0].mxu0
      %1364 = vmatprep.mubr.bf16.mxu0 0
      %1365 = vmatmul.mubr.bf16.gmra.mrb[0].mxu0 %v1224
      %v1366 = vpop.f32.mrb[0].mxu0
      %v1367 = vadd.f32 %v1258, %v1366
      %v1368 = vpop.f32.mrb[0].mxu0
      %v1369 = vpop.f32.mrb[0].mxu0
      %v1370 = vadd.f32 %v1258, %v1369
      %v1371 = vpop.f32.mrb[0].mxu0
      %1372 = vmatprep.mubr.bf16.mxu0 0
      %1373 = vmatmul.mubr.bf16.gmra.mrb[0].mxu0 %v1225
      %v1374 = vpop.f32.mrb[0].mxu0
      %v1375 = vadd.f32 %v1258, %v1374
      %v1376 = vpop.f32.mrb[0].mxu0
      %v1377 = vpop.f32.mrb[0].mxu0
      %v1378 = vadd.f32 %v1258, %v1377
      %v1379 = vpop.f32.mrb[0].mxu0
      %1380 = vmatprep.mubr.bf16.mxu0 0
      %1381 = vmatmul.mubr.bf16.gmra.mrb[0].mxu0 %v1226
      %v1382 = vpop.f32.mrb[0].mxu0
      %v1383 = vadd.f32 %v1258, %v1382
      %v1384 = vpop.f32.mrb[0].mxu0
      %v1385 = vpop.f32.mrb[0].mxu0
      %v1386 = vadd.f32 %v1258, %v1385
      %v1387 = vpop.f32.mrb[0].mxu0
      %1388 = vmatprep.mubr.bf16.mxu0 0
      %1389 = vmatmul.mubr.bf16.gmra.mrb[0].mxu0 %v1227
      %v1390 = vpop.f32.mrb[0].mxu0
      %v1391 = vadd.f32 %v1258, %v1390
      %v1392 = vpop.f32.mrb[0].mxu0
      %v1393 = vpop.f32.mrb[0].mxu0
      %v1394 = vadd.f32 %v1258, %v1393
      %v1395 = vpop.f32.mrb[0].mxu0
      %1396 = vmatprep.mubr.bf16.mxu0 0
      %1397 = vmatmul.mubr.bf16.gmra.mrb[0].mxu0 %v1228
      %v1398 = vpop.f32.mrb[0].mxu0
      %v1399 = vadd.f32 %v1258, %v1398
      %v1400 = vpop.f32.mrb[0].mxu0
      %v1401 = vpop.f32.mrb[0].mxu0
      %v1402 = vadd.f32 %v1258, %v1401
      %v1403 = vpop.f32.mrb[0].mxu0
      %1404 = vmatprep.mubr.bf16.mxu0 0
      %1405 = vmatmul.mubr.bf16.gmra.mrb[0].mxu0 %v1229
      %v1406 = vpop.f32.mrb[0].mxu0
      %v1407 = vadd.f32 %v1258, %v1406
      %v1408 = vpop.f32.mrb[0].mxu0
      %v1409 = vpop.f32.mrb[0].mxu0
      %v1410 = vadd.f32 %v1258, %v1409
      %v1411 = vpop.f32.mrb[0].mxu0
      %1412 = vmatprep.mubr.bf16.mxu0 0
      %1413 = vmatmul.mubr.bf16.gmra.mrb[0].mxu0 %v1230
      %v1414 = vpop.f32.mrb[0].mxu0
      %v1415 = vadd.f32 %v1258, %v1414
      %v1416 = vpop.f32.mrb[0].mxu0
      %v1417 = vpop.f32.mrb[0].mxu0
      %v1418 = vadd.f32 %v1258, %v1417
      %v1419 = vpop.f32.mrb[0].mxu0
      %1420 = vmatprep.mubr.bf16.mxu0 0
      %1421 = vmatmul.mubr.bf16.gmra.mrb[0].mxu0 %v1231
      %v1422 = vpop.f32.mrb[0].mxu0
      %v1423 = vadd.f32 %v1258, %v1422
      %v1424 = vpop.f32.mrb[0].mxu0
      %v1425 = vpop.f32.mrb[0].mxu0
      %v1426 = vadd.f32 %v1258, %v1425
      %v1427 = vpop.f32.mrb[0].mxu0
      %1428 = vmatprep.mubr.bf16.mxu0 0
      %1429 = vmatmul.mubr.bf16.gmra.mrb[0].mxu0 %v1232
      %v1430 = vpop.f32.mrb[0].mxu0
      %v1431 = vadd.f32 %v1258, %v1430
      %v1432 = vpop.f32.mrb[0].mxu0
      %v1433 = vpop.f32.mrb[0].mxu0
      %v1434 = vadd.f32 %v1258, %v1433
      %v1435 = vpop.f32.mrb[0].mxu0
      %1436 = vmatprep.mubr.bf16.mxu0 0
      %1437 = vmatmul.mubr.bf16.gmra.mrb[0].mxu0 %v1233
      %v1438 = vpop.f32.mrb[0].mxu0
      %v1439 = vadd.f32 %v1258, %v1438
      %v1440 = vpop.f32.mrb[0].mxu0
      %v1441 = vpop.f32.mrb[0].mxu0
      %v1442 = vadd.f32 %v1258, %v1441
      %v1443 = vpop.f32.mrb[0].mxu0
      %1444 = vmatprep.mubr.bf16.mxu0 0
      %1445 = vmatmul.mubr.bf16.gmra.mrb[0].mxu0 %v1234
      %v1446 = vpop.f32.mrb[0].mxu0
      %v1447 = vadd.f32 %v1258, %v1446
      %v1448 = vpop.f32.mrb[0].mxu0
      %v1449 = vpop.f32.mrb[0].mxu0
      %v1450 = vadd.f32 %v1258, %v1449
      %v1451 = vpop.f32.mrb[0].mxu0
      %1452 = vmatprep.mubr.bf16.mxu0 0
      %1453 = vmatmul.mubr.bf16.gmra.mrb[0].mxu0 %v1235
      %v1454 = vpop.f32.mrb[0].mxu0
      %v1455 = vadd.f32 %v1258, %v1454
      %v1456 = vpop.f32.mrb[0].mxu0
      %v1457 = vpop.f32.mrb[0].mxu0
      %v1458 = vadd.f32 %v1258, %v1457
      %v1459 = vpop.f32.mrb[0].mxu0
      %1460 = vmatprep.mubr.bf16.mxu0 0
      %1461 = vmatmul.mubr.bf16.gmra.mrb[0].mxu0 %v1236
      %v1462 = vpop.f32.mrb[0].mxu0
      %v1463 = vadd.f32 %v1258, %v1462
      %v1464 = vpop.f32.mrb[0].mxu0
      %v1465 = vpop.f32.mrb[0].mxu0
      %v1466 = vadd.f32 %v1258, %v1465
      %v1467 = vpop.f32.mrb[0].mxu0
      %1468 = vdwg.mxu0
      %1469 = vst [vmem:[#allocation9] sm:$0xff] %v1343
      %1470 = vst [vmem:[#allocation9 + $0x8] sm:$0xff] %v1346
      %1471 = vst [vmem:[#allocation9 + $0x10] sm:$0xff] %v1351
      %1472 = vst [vmem:[#allocation9 + $0x18] sm:$0xff] %v1354
      %1473 = vst [vmem:[#allocation9 + $0x20] sm:$0xff] %v1359
      %1474 = vst [vmem:[#allocation9 + $0x28] sm:$0xff] %v1362
      %1475 = vst [vmem:[#allocation9 + $0x30] sm:$0xff] %v1367
      %1476 = vst [vmem:[#allocation9 + $0x38] sm:$0xff] %v1370
      %1477 = vst [vmem:[#allocation9 + $0x40] sm:$0xff] %v1375
      %1478 = vst [vmem:[#allocation9 + $0x48] sm:$0xff] %v1378
      %1479 = vst [vmem:[#allocation9 + $0x50] sm:$0xff] %v1383
      %1480 = vst [vmem:[#allocation9 + $0x58] sm:$0xff] %v1386
      %1481 = vst [vmem:[#allocation9 + $0x60] sm:$0xff] %v1391
      %1482 = vst [vmem:[#allocation9 + $0x68] sm:$0xff] %v1394
      %1483 = vst [vmem:[#allocation9 + $0x70] sm:$0xff] %v1399
      %1484 = vst [vmem:[#allocation9 + $0x78] sm:$0xff] %v1402
      %1485 = vst [vmem:[#allocation9 + $0x80] sm:$0xff] %v1407
      %1486 = vst [vmem:[#allocation9 + $0x88] sm:$0xff] %v1410
      %1487 = vst [vmem:[#allocation9 + $0x90] sm:$0xff] %v1415
      %1488 = vst [vmem:[#allocation9 + $0x98] sm:$0xff] %v1418
      %1489 = vst [vmem:[#allocation9 + $0xa0] sm:$0xff] %v1423
      %1490 = vst [vmem:[#allocation9 + $0xa8] sm:$0xff] %v1426
      %1491 = vst [vmem:[#allocation9 + $0xb0] sm:$0xff] %v1431
      %1492 = vst [vmem:[#allocation9 + $0xb8] sm:$0xff] %v1434
      %1493 = vst [vmem:[#allocation9 + $0xc0] sm:$0xff] %v1439
      %1494 = vst [vmem:[#allocation9 + $0xc8] sm:$0xff] %v1442
      %1495 = vst [vmem:[#allocation9 + $0xd0] sm:$0xff] %v1447
      %1496 = vst [vmem:[#allocation9 + $0xd8] sm:$0xff] %v1450
      %1497 = vst [vmem:[#allocation9 + $0xe0] sm:$0xff] %v1455
      %1498 = vst [vmem:[#allocation9 + $0xe8] sm:$0xff] %v1458
      %1499 = vst [vmem:[#allocation9 + $0xf0] sm:$0xff] %v1463
      %1500 = vst [vmem:[#allocation9 + $0xf8] sm:$0xff] %v1466
    $region49: #{tpu_custom_call.1} parent=1 // pred_fallthru
      _
    // Predicated region
    $region50: #{tpu_custom_call.1} parent=1 // pred_check
      _
    $region51: #{tpu_custom_call.1} parent=1 // pred_check_branch
      %1502 = sbr.rel (0) target = $region53
    $region52: #{tpu_custom_call.1} parent=1 // pred_region
      %s1504 = ssub.s32 4096, 4096
      %1505 = vsyncadd [#allocation5], %s1504
      %s1506 = sshll.u32 [#allocation9], 4
      %s1507 = int_to_ptr.vmem [resolvable:$true] %s1506
      %1512 = dma.vmem_to_hbm [thread:$0]  %s1507, 4096, %s7, [#allocation5], 128, 128, 8
    $region53: #{tpu_custom_call.1} parent=1 // pred_fallthru
      _
    // Predicated region
    $region54: #{tpu_custom_call.1} parent=1 // pred_check
      _
    $region55: #{tpu_custom_call.1} parent=1 // pred_check_branch
      %1514 = sbr.rel (0) target = $region57
    $region56: #{tpu_custom_call.1} parent=1 // pred_region
      %1515 = dma.done [#allocation5], 4096
    $region57: #{tpu_custom_call.1} parent=1 // pred_fallthru
      _
    %1516 = vsyncpa [#allocation4], 1
    %1517 = vsyncpa [#allocation7], 1
    %1518 = vsyncpa [#allocation5], 1

</llo_original>
